<compile_context>
chip_gen: v7x
topology: tpu7x:2x2x1
jax: 0.10.0
libtpu: 0.0.40
codegen_flags: <defaults>
</compile_context>

<pallas_src>
import functools

import numpy as np
import jax
import jax.numpy as jnp
from jax.experimental import pallas as pl
from jax.experimental.pallas import tpu as pltpu

EPS = 1e-5
MXU_DTYPE = jnp.bfloat16   # MXU inputs (weights + im2col patch); acc stays f32
ACT_DTYPE = jnp.bfloat16   # inter-kernel activation storage (y1 / y2)


def _round_up(x, m):
    return -(-x // m) * m


def _vmem_limit():
    # Per-chip VMEM budget (64 MiB on v7x vs 128 MiB on v5e/v6e); leave 25%
    # headroom for compiler temporaries / relayouts.
    try:
        return int(pltpu.get_tpu_info().vmem_capacity_bytes * 3 // 4)
    except Exception:
        return 32 * 1024 * 1024


def _taps(wp2):
    # flat offset of tap (dh, dw) in the row-flattened padded image
    return [dh * wp2 + dw for dh in range(3) for dw in range(3)]


def _im2col_dot(x, w, b, wp2, n_pos):
    """x: (Cin_p, L), w: (Cout, 9*Cin_p) bf16, b: (Cout, 1) f32 -> (Cout, n_pos) f32.

    The nine 3x3 taps are contiguous lane-shifted slices of the row-flattened
    padded image; stacking them along the (16-aligned) channel/sublane axis
    builds the im2col patch once, and the conv becomes a single bf16 MXU matmul
    with K = 9*Cin_p and f32 accumulation.
    """
    # TODO(synk): once spatially tiled, consider 3 accumulated K=3*Cin matmuls
    # (one per kernel row) to cut the materialized patch 3x (v7x VMEM relief).
    x = x.astype(MXU_DTYPE)
    patch = jnp.concatenate([x[:, o:o + n_pos] for o in _taps(wp2)], axis=0)
    acc = jnp.dot(w.astype(MXU_DTYPE), patch,
                  preferred_element_type=jnp.float32)
    return acc + b


# ----------------------------------------------------------------------------
# Kernel 1: conv1 (+bias) for one image, fused per-image BN1 sum / sum-of-sq.
# ----------------------------------------------------------------------------
def _conv1_bn_stats_kernel(x_ref, w_ref, b_ref, imask_ref,
                           y_ref, sum_ref, sq_ref, *, H, W):
    wp2 = W + 2
    lp = (H + 3) * wp2        # conv output emitted at every padded position

    x = x_ref[0]                                              # (Cin_p, L_in) bf16
    acc = _im2col_dot(x, w_ref[...], b_ref[...], wp2, lp)     # (C1, Lp) f32
    y_ref[0] = acc.astype(y_ref.dtype)                        # bf16 store

    # Per-image BN statistics over the H*W valid pixels only (f32, from the
    # pre-rounding accumulator); cross-batch reduction happens in XLA so the
    # batch grid axis can stay "parallel" (megacore-friendly).
    accm = acc * imask_ref[...]               # (1, Lp) broadcasts over channels
    sum_ref[0] = jnp.sum(accm, axis=1, keepdims=True)
    sq_ref[0] = jnp.sum(accm * acc, axis=1, keepdims=True)


# ----------------------------------------------------------------------------
# Kernel 2: fused (BN1 affine + ReLU + zero-padding) -> conv2 -> BN2 stats.
# ----------------------------------------------------------------------------
def _bn_relu_conv2_bn_stats_kernel(y1_ref, sc_ref, sh_ref, w_ref, b_ref,
                                   imask_ref, vmask_ref,
                                   y2_ref, sum_ref, sq_ref, *, H, W):
    wp2 = W + 2
    mw = H * wp2

    y1 = y1_ref[0].astype(jnp.float32)                        # (C, Lp) f32
    a = jnp.maximum(y1 * sc_ref[...] + sh_ref[...], 0.0)      # folded BN1+ReLU
    a = a * imask_ref[...]    # zero non-interior positions == conv zero padding

    acc = _im2col_dot(a, w_ref[...], b_ref[...], wp2, mw)     # (C1, Mw) f32
    y2_ref[0] = acc.astype(y2_ref.dtype)                      # bf16 store

    accm = acc * vmask_ref[...]               # drop the 2 "wide" garbage columns
    sum_ref[0] = jnp.sum(accm, axis=1, keepdims=True)
    sq_ref[0] = jnp.sum(accm * acc, axis=1, keepdims=True)


# ----------------------------------------------------------------------------
# Kernel 3: epilogue — folded BN2 affine + ReLU + wide->compact output write.
# ----------------------------------------------------------------------------
def _bn_relu_compact_kernel(y_ref, sc_ref, sh_ref, o_ref, *, W):
    y = y_ref[0].astype(jnp.float32)                          # (C, H, W+2)
    a = jnp.maximum(y * sc_ref[...] + sh_ref[...], 0.0)       # f32 elementwise
    o_ref[0] = a[:, :, :W].astype(o_ref.dtype)                # compact (C, H, W)


# ----------------------------------------------------------------------------
# pallas_call wrappers
# ----------------------------------------------------------------------------
def _conv1_call(x_ext, w1m, b1, imask, H, W):
    N, cin_p, l_in = x_ext.shape
    c1 = w1m.shape[0]
    lp = (H + 3) * (W + 2)
    kernel = functools.partial(_conv1_bn_stats_kernel, H=H, W=W)
    return pl.pallas_call(
        kernel,
        out_shape=(jax.ShapeDtypeStruct((N, c1, lp), ACT_DTYPE),
                   jax.ShapeDtypeStruct((N, c1, 1), jnp.float32),
                   jax.ShapeDtypeStruct((N, c1, 1), jnp.float32)),
        grid_spec=pltpu.PrefetchScalarGridSpec(
            num_scalar_prefetch=0,
            grid=(N,),
            in_specs=[
                pl.BlockSpec((1, cin_p, l_in), lambda n: (n, 0, 0)),
                pl.BlockSpec((c1, 9 * cin_p), lambda n: (0, 0)),
                pl.BlockSpec((c1, 1), lambda n: (0, 0)),
                pl.BlockSpec((1, lp), lambda n: (0, 0)),
            ],
            out_specs=(
                pl.BlockSpec((1, c1, lp), lambda n: (n, 0, 0)),
                pl.BlockSpec((1, c1, 1), lambda n: (n, 0, 0)),  # per-image stats
                pl.BlockSpec((1, c1, 1), lambda n: (n, 0, 0)),
            ),
        ),
        compiler_params=pltpu.CompilerParams(
            dimension_semantics=("parallel",),
            vmem_limit_bytes=_vmem_limit(),
        ),
    )(x_ext, w1m, b1, imask)


def _conv2_call(y1, sc1, sh1, w2m, b2, imask, vmask, H, W):
    N, c1, lp = y1.shape
    mw = H * (W + 2)
    kernel = functools.partial(_bn_relu_conv2_bn_stats_kernel, H=H, W=W)
    return pl.pallas_call(
        kernel,
        out_shape=(jax.ShapeDtypeStruct((N, c1, mw), ACT_DTYPE),
                   jax.ShapeDtypeStruct((N, c1, 1), jnp.float32),
                   jax.ShapeDtypeStruct((N, c1, 1), jnp.float32)),
        grid_spec=pltpu.PrefetchScalarGridSpec(
            num_scalar_prefetch=0,
            grid=(N,),
            in_specs=[
                pl.BlockSpec((1, c1, lp), lambda n: (n, 0, 0)),
                pl.BlockSpec((c1, 1), lambda n: (0, 0)),
                pl.BlockSpec((c1, 1), lambda n: (0, 0)),
                pl.BlockSpec((c1, 9 * c1), lambda n: (0, 0)),
                pl.BlockSpec((c1, 1), lambda n: (0, 0)),
                pl.BlockSpec((1, lp), lambda n: (0, 0)),
                pl.BlockSpec((1, mw), lambda n: (0, 0)),
            ],
            out_specs=(
                pl.BlockSpec((1, c1, mw), lambda n: (n, 0, 0)),
                pl.BlockSpec((1, c1, 1), lambda n: (n, 0, 0)),
                pl.BlockSpec((1, c1, 1), lambda n: (n, 0, 0)),
            ),
        ),
        compiler_params=pltpu.CompilerParams(
            dimension_semantics=("parallel",),
            vmem_limit_bytes=_vmem_limit(),
        ),
    )(y1, sc1, sh1, w2m, b2, imask, vmask)


def _bn_relu_compact_call(y2w, sc2, sh2, W):
    N, c1, H, wp2 = y2w.shape
    kernel = functools.partial(_bn_relu_compact_kernel, W=W)
    return pl.pallas_call(
        kernel,
        out_shape=jax.ShapeDtypeStruct((N, c1, H, W), jnp.float32),
        grid_spec=pltpu.PrefetchScalarGridSpec(
            num_scalar_prefetch=0,
            grid=(N,),
            in_specs=[
                pl.BlockSpec((1, c1, H, wp2), lambda n: (n, 0, 0, 0)),
                pl.BlockSpec((c1, 1, 1), lambda n: (0, 0, 0)),
                pl.BlockSpec((c1, 1, 1), lambda n: (0, 0, 0)),
            ],
            out_specs=pl.BlockSpec((1, c1, H, W), lambda n: (n, 0, 0, 0)),
        ),
        compiler_params=pltpu.CompilerParams(
            dimension_semantics=("parallel",),
            vmem_limit_bytes=_vmem_limit(),
        ),
    )(y2w, sc2, sh2)


# ----------------------------------------------------------------------------
# Parameter / stats plumbing (tiny XLA-side scalars and weight reshapes)
# ----------------------------------------------------------------------------
def _im2col_weight(w, cin_p):
    """PyTorch (Cout, Cin, 3, 3) -> (Cout, 9*Cin_p) bf16; (dh, dw) outer, chan inner."""
    cout, cin = w.shape[0], w.shape[1]
    wp = jnp.pad(w.astype(jnp.float32), ((0, 0), (0, cin_p - cin), (0, 0), (0, 0)))
    return jnp.transpose(wp, (0, 2, 3, 1)).reshape(cout, 9 * cin_p).astype(MXU_DTYPE)


def _fold_bn(s_per_img, q_per_img, count, gamma, beta):
    """Per-image (N, C, 1) sums -> folded BN scale/shift (C, 1) f32."""
    s = jnp.sum(s_per_img, axis=0)                  # (C, 1) — tiny XLA reduce
    q = jnp.sum(q_per_img, axis=0)
    mean = s / count
    # Biased variance == PyTorch BatchNorm2d train-mode normalization.
    # TODO(synk): E[x^2]-E[x]^2 loses precision when |mean| >> std; use a shifted
    # two-pass if bit parity matters for such inputs.
    var = q / count - mean * mean
    scale = gamma.reshape(-1, 1).astype(jnp.float32) * jax.lax.rsqrt(var + EPS)
    shift = beta.reshape(-1, 1).astype(jnp.float32) - mean * scale
    return scale, shift


# ----------------------------------------------------------------------------
# DoubleConv forward: (Conv -> BN -> ReLU) x 2  (PyTorch train-mode BN semantics)
# ----------------------------------------------------------------------------
def double_conv(x, w1, b1, g1, beta1, w2, b2, g2, beta2):
    """x: (N, Cin, H, W) f32, conv weights in PyTorch (Cout, Cin, 3, 3) layout."""
    N, cin, H, W = x.shape
    c1 = w1.shape[0]
    assert w1.shape == (c1, cin, 3, 3) and w2.shape == (c1, c1, 3, 3)
    assert c1 % 16 == 0, "out_channels must be a multiple of 16 (bf16 sublane tile)"

    wp2 = W + 2
    head = wp2 + 1                     # flat offset of padded pixel (1, 1)
    mw = H * wp2                       # "wide" output length (valid cols 0..W-1)
    lp = (H + 3) * wp2                 # conv1 output length (all padded positions)
    l_in = lp + 2 * wp2 + 2            # lp + largest tap offset
    cin_p = max(16, _round_up(cin, 16))  # bf16 sublane-aligned im2col rows

    # One fused cast + zero-pad + flatten in XLA; no NCHW<->NHWC transpose.
    xpad = jnp.pad(x.astype(ACT_DTYPE),
                   ((0, 0), (0, cin_p - cin), (1, 1), (1, 1)))
    xflat = xpad.reshape(N, cin_p, (H + 2) * wp2)
    x_ext = jnp.pad(xflat, ((0, 0), (0, 0),
                            (head, l_in - head - (H + 2) * wp2)))

    w1m = _im2col_weight(w1, cin_p)                  # (C1, 9*Cin_p) bf16
    w2m = _im2col_weight(w2, c1)                     # (C1, 9*C1)    bf16
    b1c = b1.reshape(c1, 1).astype(jnp.float32)
    b2c = b2.reshape(c1, 1).astype(jnp.float32)

    # Static 0/1 masks over the flattened padded index space (host constants).
    # TODO(synk): generate these in-kernel (broadcasted_iota) once the spatial
    # layout is 2-D tiled; in the flat layout that needs vector int div/mod.
    p = np.arange(lp)
    interior = ((p // wp2 >= 1) & (p // wp2 <= H) &
                (p % wp2 >= 1) & (p % wp2 <= W))
    imask = jnp.asarray(interior.reshape(1, lp), jnp.float32)
    o = np.arange(mw)
    vmask = jnp.asarray((o % wp2 < W).reshape(1, mw), jnp.float32)

    count = float(N * H * W)

    y1, s1, q1 = _conv1_call(x_ext, w1m, b1c, imask, H, W)
    sc1, sh1 = _fold_bn(s1, q1, count, g1, beta1)

    y2, s2, q2 = _conv2_call(y1, sc1, sh1, w2m, b2c, imask, vmask, H, W)
    sc2, sh2 = _fold_bn(s2, q2, count, g2, beta2)

    # Free row-major metadata reshape; the wide->compact slice happens inside
    # kernel 3 (saves a full output-sized HBM read+write pass).
    y2w = y2.reshape(N, c1, H, wp2)
    out = _bn_relu_compact_call(y2w, sc2.reshape(c1, 1, 1),
                                sh2.reshape(c1, 1, 1), W)
    return out
    # TODO(synk): running_mean / running_var buffer updates (training-time side
    # effect of nn.BatchNorm2d) are not replicated; they don't affect the output.


# ----------------------------------------------------------------------------
# Pure-JAX reference (for the self-check)
# ----------------------------------------------------------------------------
def _reference(x, w1, b1, g1, beta1, w2, b2, g2, beta2):
    def conv(x_, w, b):
        y = jax.lax.conv_general_dilated(
            x_, w, window_strides=(1, 1), padding=((1, 1), (1, 1)),
            dimension_numbers=("NCHW", "OIHW", "NCHW"),
            precision=jax.lax.Precision.HIGHEST)
        return y + b.reshape(1, -1, 1, 1)

    def bn_relu(y, g, beta):
        mean = jnp.mean(y, axis=(0, 2, 3), keepdims=True)
        var = jnp.mean(jnp.square(y - mean), axis=(0, 2, 3), keepdims=True)
        yn = (y - mean) * jax.lax.rsqrt(var + EPS)
        return jnp.maximum(yn * g.reshape(1, -1, 1, 1) + beta.reshape(1, -1, 1, 1), 0.0)

    y = bn_relu(conv(x, w1, b1), g1, beta1)
    return bn_relu(conv(y, w2, b2), g2, beta2)


if __name__ == "__main__":
    key = jax.random.PRNGKey(0)
    kx, kw1, kb1, kg1, kB1, kw2, kb2, kg2, kB2 = jax.random.split(key, 9)

    N, Cin, H, W = 2, 4, 16, 16
    Cout = 16

    x = jax.random.normal(kx, (N, Cin, H, W), jnp.float32)
    w1 = jax.random.normal(kw1, (Cout, Cin, 3, 3), jnp.float32) * 0.1
    b1 = jax.random.normal(kb1, (Cout,), jnp.float32) * 0.05
    g1 = 1.0 + 0.1 * jax.random.normal(kg1, (Cout,), jnp.float32)
    beta1 = 0.1 * jax.random.normal(kB1, (Cout,), jnp.float32)
    w2 = jax.random.normal(kw2, (Cout, Cout, 3, 3), jnp.float32) * 0.1
    b2 = jax.random.normal(kb2, (Cout,), jnp.float32) * 0.05
    g2 = 1.0 + 0.1 * jax.random.normal(kg2, (Cout,), jnp.float32)
    beta2 = 0.1 * jax.random.normal(kB2, (Cout,), jnp.float32)

    out = jax.jit(double_conv)(x, w1, b1, g1, beta1, w2, b2, g2, beta2)
    out = jax.block_until_ready(out)

    assert out.shape == (N, Cout, H, W), out.shape
    assert bool(jnp.all(out >= 0.0))          # ReLU output is non-negative

    ref = _reference(x, w1, b1, g1, beta1, w2, b2, g2, beta2)
    err = float(jnp.max(jnp.abs(out - ref)))
    # bf16 MXU inputs + bf16 intermediates vs an f32 HIGHEST-precision reference:
    # typical max-abs error ~1e-2 at these shapes; 1e-1 gives safe margin.
    assert err < 1e-1, f"mismatch vs reference, max abs err = {err}"
    print("KERNEL_OK")
</pallas_src>

<mosaic_0001>
module attributes {stable_mosaic.version = 11 : i64} {
  func.func @_conv1_bn_stats_kernel(%arg0: i32, %arg1: memref<1x16x380xbf16, #tpu.memory_space<vmem>>, %arg2: memref<16x144xbf16, #tpu.memory_space<vmem>>, %arg3: memref<16x1xf32, #tpu.memory_space<vmem>>, %arg4: memref<1x342xf32, #tpu.memory_space<vmem>>, %arg5: memref<1x16x342xbf16, #tpu.memory_space<vmem>>, %arg6: memref<1x16x1xf32, #tpu.memory_space<vmem>>, %arg7: memref<1x16x1xf32, #tpu.memory_space<vmem>>) attributes {dimension_semantics = [#tpu.dimension_semantics<parallel>], iteration_bounds = array<i64: 2>, scalar_prefetch = 0 : i64, scratch_operands = 0 : i64, tpu.core_type = #tpu.core_type<tc>, window_params = [{transform_indices = @transform_0, window_bounds = array<i64: 1, 16, 380>}, {pipeline_mode = #tpu.pipeline_mode<synchronous>, transform_indices = @transform_1, window_bounds = array<i64: 16, 144>}, {pipeline_mode = #tpu.pipeline_mode<synchronous>, transform_indices = @transform_2, window_bounds = array<i64: 16, 1>}, {pipeline_mode = #tpu.pipeline_mode<synchronous>, transform_indices = @transform_3, window_bounds = array<i64: 1, 342>}, {transform_indices = @transform_4, window_bounds = array<i64: 1, 16, 342>}, {transform_indices = @transform_5, window_bounds = array<i64: 1, 16, 1>}, {transform_indices = @transform_6, window_bounds = array<i64: 1, 16, 1>}]} {
    %c0 = arith.constant 0 : index
    %c0_0 = arith.constant 0 : index
    %c0_1 = arith.constant 0 : index
    %0 = vector.load %arg1[%c0, %c0_0, %c0_1] : memref<1x16x380xbf16, #tpu.memory_space<vmem>>, vector<1x16x380xbf16>
    %1 = vector.shape_cast %0 : vector<1x16x380xbf16> to vector<16x380xbf16>
    %c0_2 = arith.constant 0 : index
    %c0_3 = arith.constant 0 : index
    %2 = vector.load %arg2[%c0_2, %c0_3] : memref<16x144xbf16, #tpu.memory_space<vmem>>, vector<16x144xbf16>
    %c0_4 = arith.constant 0 : index
    %c0_5 = arith.constant 0 : index
    %3 = vector.load %arg3[%c0_4, %c0_5] : memref<16x1xf32, #tpu.memory_space<vmem>>, vector<16x1xf32>
    %4 = vector.extract_strided_slice %1 {offsets = [0, 0], sizes = [16, 342], strides = [1, 1]} : vector<16x380xbf16> to vector<16x342xbf16>
    %5 = vector.extract_strided_slice %1 {offsets = [0, 1], sizes = [16, 342], strides = [1, 1]} : vector<16x380xbf16> to vector<16x342xbf16>
    %6 = vector.extract_strided_slice %1 {offsets = [0, 2], sizes = [16, 342], strides = [1, 1]} : vector<16x380xbf16> to vector<16x342xbf16>
    %7 = vector.extract_strided_slice %1 {offsets = [0, 18], sizes = [16, 342], strides = [1, 1]} : vector<16x380xbf16> to vector<16x342xbf16>
    %8 = vector.extract_strided_slice %1 {offsets = [0, 19], sizes = [16, 342], strides = [1, 1]} : vector<16x380xbf16> to vector<16x342xbf16>
    %9 = vector.extract_strided_slice %1 {offsets = [0, 20], sizes = [16, 342], strides = [1, 1]} : vector<16x380xbf16> to vector<16x342xbf16>
    %10 = vector.extract_strided_slice %1 {offsets = [0, 36], sizes = [16, 342], strides = [1, 1]} : vector<16x380xbf16> to vector<16x342xbf16>
    %11 = vector.extract_strided_slice %1 {offsets = [0, 37], sizes = [16, 342], strides = [1, 1]} : vector<16x380xbf16> to vector<16x342xbf16>
    %12 = vector.extract_strided_slice %1 {offsets = [0, 38], sizes = [16, 342], strides = [1, 1]} : vector<16x380xbf16> to vector<16x342xbf16>
    %13 = tpu.concatenate %4, %5, %6, %7, %8, %9, %10, %11, %12 in 0 : vector<16x342xbf16>, vector<16x342xbf16>, vector<16x342xbf16>, vector<16x342xbf16>, vector<16x342xbf16>, vector<16x342xbf16>, vector<16x342xbf16>, vector<16x342xbf16>, vector<16x342xbf16> -> vector<144x342xbf16>
    %cst = arith.constant dense<0.000000e+00> : vector<16x342xf32>
    %14 = tpu.matmul %2, %13, %cst {dimension_numbers = #tpu.dot_dimension_numbers<[1], [0], [0], [1], [0, 0, 1, 1], [], []>} : vector<16x144xbf16>, vector<144x342xbf16>, vector<16x342xf32> -> vector<16x342xf32>
    %15 = vector.broadcast %3 : vector<16x1xf32> to vector<16x342xf32>
    %16 = arith.addf %14, %15 : vector<16x342xf32>
    %17 = arith.truncf %16 : vector<16x342xf32> to vector<16x342xbf16>
    %c0_6 = arith.constant 0 : index
    %c0_7 = arith.constant 0 : index
    %c0_8 = arith.constant 0 : index
    %18 = vector.load %arg5[%c0_6, %c0_7, %c0_8] : memref<1x16x342xbf16, #tpu.memory_space<vmem>>, vector<1x16x342xbf16>
    %19 = vector.shape_cast %18 : vector<1x16x342xbf16> to vector<16x342xbf16>
    %20 = vector.shape_cast %17 : vector<16x342xbf16> to vector<1x16x342xbf16>
    tpu.vector_store %arg5[%c0_6, %c0_7, %c0_8], %20 {strides = array<i32>} : memref<1x16x342xbf16, #tpu.memory_space<vmem>>, vector<1x16x342xbf16>,
    %c0_9 = arith.constant 0 : index
    %c0_10 = arith.constant 0 : index
    %21 = vector.load %arg4[%c0_9, %c0_10] : memref<1x342xf32, #tpu.memory_space<vmem>>, vector<1x342xf32>
    %22 = vector.broadcast %21 : vector<1x342xf32> to vector<16x342xf32>
    %23 = arith.mulf %16, %22 : vector<16x342xf32>
    %cst_11 = arith.constant dense<0.000000e+00> : vector<16xf32>
    %24 = vector.multi_reduction <add>, %23, %cst_11 [1] : vector<16x342xf32> to vector<16xf32>
    %25 = vector.shape_cast %24 : vector<16xf32> to vector<16x1xf32>
    %c0_12 = arith.constant 0 : index
    %c0_13 = arith.constant 0 : index
    %c0_14 = arith.constant 0 : index
    %26 = vector.load %arg6[%c0_12, %c0_13, %c0_14] : memref<1x16x1xf32, #tpu.memory_space<vmem>>, vector<1x16x1xf32>
    %27 = vector.shape_cast %26 : vector<1x16x1xf32> to vector<16x1xf32>
    %28 = vector.shape_cast %25 : vector<16x1xf32> to vector<1x16x1xf32>
    tpu.vector_store %arg6[%c0_12, %c0_13, %c0_14], %28 {strides = array<i32>} : memref<1x16x1xf32, #tpu.memory_space<vmem>>, vector<1x16x1xf32>,
    %29 = arith.mulf %23, %16 : vector<16x342xf32>
    %cst_15 = arith.constant dense<0.000000e+00> : vector<16xf32>
    %30 = vector.multi_reduction <add>, %29, %cst_15 [1] : vector<16x342xf32> to vector<16xf32>
    %31 = vector.shape_cast %30 : vector<16xf32> to vector<16x1xf32>
    %c0_16 = arith.constant 0 : index
    %c0_17 = arith.constant 0 : index
    %c0_18 = arith.constant 0 : index
    %32 = vector.load %arg7[%c0_16, %c0_17, %c0_18] : memref<1x16x1xf32, #tpu.memory_space<vmem>>, vector<1x16x1xf32>
    %33 = vector.shape_cast %32 : vector<1x16x1xf32> to vector<16x1xf32>
    %34 = vector.shape_cast %31 : vector<16x1xf32> to vector<1x16x1xf32>
    tpu.vector_store %arg7[%c0_16, %c0_17, %c0_18], %34 {strides = array<i32>} : memref<1x16x1xf32, #tpu.memory_space<vmem>>, vector<1x16x1xf32>,
    return
  }
  func.func @transform_0(%arg0: i32) -> (i32, i32, i32) {
    %c0_i32 = arith.constant 0 : i32
    %c0_i32_0 = arith.constant 0 : i32
    %c0_i32_1 = arith.constant 0 : i32
    return %arg0, %c0_i32, %c0_i32_0 : i32, i32, i32
  }
  func.func @transform_1(%arg0: i32) -> (i32, i32) {
    %c0_i32 = arith.constant 0 : i32
    %c0_i32_0 = arith.constant 0 : i32
    %c0_i32_1 = arith.constant 0 : i32
    return %c0_i32, %c0_i32_0 : i32, i32
  }
  func.func @transform_2(%arg0: i32) -> (i32, i32) {
    %c0_i32 = arith.constant 0 : i32
    %c0_i32_0 = arith.constant 0 : i32
    %c0_i32_1 = arith.constant 0 : i32
    return %c0_i32, %c0_i32_0 : i32, i32
  }
  func.func @transform_3(%arg0: i32) -> (i32, i32) {
    %c0_i32 = arith.constant 0 : i32
    %c0_i32_0 = arith.constant 0 : i32
    %c0_i32_1 = arith.constant 0 : i32
    return %c0_i32, %c0_i32_0 : i32, i32
  }
  func.func @transform_4(%arg0: i32) -> (i32, i32, i32) {
    %c0_i32 = arith.constant 0 : i32
    %c0_i32_0 = arith.constant 0 : i32
    %c0_i32_1 = arith.constant 0 : i32
    return %arg0, %c0_i32, %c0_i32_0 : i32, i32, i32
  }
  func.func @transform_5(%arg0: i32) -> (i32, i32, i32) {
    %c0_i32 = arith.constant 0 : i32
    %c0_i32_0 = arith.constant 0 : i32
    %c0_i32_1 = arith.constant 0 : i32
    return %arg0, %c0_i32, %c0_i32_0 : i32, i32, i32
  }
  func.func @transform_6(%arg0: i32) -> (i32, i32, i32) {
    %c0_i32 = arith.constant 0 : i32
    %c0_i32_0 = arith.constant 0 : i32
    %c0_i32_1 = arith.constant 0 : i32
    return %arg0, %c0_i32, %c0_i32_0 : i32, i32, i32
  }
}

module attributes {stable_mosaic.version = 11 : i64} {
  func.func @_bn_relu_conv2_bn_stats_kernel(%arg0: i32, %arg1: memref<1x16x342xbf16, #tpu.memory_space<vmem>>, %arg2: memref<16x1xf32, #tpu.memory_space<vmem>>, %arg3: memref<16x1xf32, #tpu.memory_space<vmem>>, %arg4: memref<16x144xbf16, #tpu.memory_space<vmem>>, %arg5: memref<16x1xf32, #tpu.memory_space<vmem>>, %arg6: memref<1x342xf32, #tpu.memory_space<vmem>>, %arg7: memref<1x288xf32, #tpu.memory_space<vmem>>, %arg8: memref<1x16x288xbf16, #tpu.memory_space<vmem>>, %arg9: memref<1x16x1xf32, #tpu.memory_space<vmem>>, %arg10: memref<1x16x1xf32, #tpu.memory_space<vmem>>) attributes {dimension_semantics = [#tpu.dimension_semantics<parallel>], iteration_bounds = array<i64: 2>, scalar_prefetch = 0 : i64, scratch_operands = 0 : i64, tpu.core_type = #tpu.core_type<tc>, window_params = [{transform_indices = @transform_0, window_bounds = array<i64: 1, 16, 342>}, {pipeline_mode = #tpu.pipeline_mode<synchronous>, transform_indices = @transform_1, window_bounds = array<i64: 16, 1>}, {pipeline_mode = #tpu.pipeline_mode<synchronous>, transform_indices = @transform_2, window_bounds = array<i64: 16, 1>}, {pipeline_mode = #tpu.pipeline_mode<synchronous>, transform_indices = @transform_3, window_bounds = array<i64: 16, 144>}, {pipeline_mode = #tpu.pipeline_mode<synchronous>, transform_indices = @transform_4, window_bounds = array<i64: 16, 1>}, {pipeline_mode = #tpu.pipeline_mode<synchronous>, transform_indices = @transform_5, window_bounds = array<i64: 1, 342>}, {pipeline_mode = #tpu.pipeline_mode<synchronous>, transform_indices = @transform_6, window_bounds = array<i64: 1, 288>}, {transform_indices = @transform_7, window_bounds = array<i64: 1, 16, 288>}, {transform_indices = @transform_8, window_bounds = array<i64: 1, 16, 1>}, {transform_indices = @transform_9, window_bounds = array<i64: 1, 16, 1>}]} {
    %c0 = arith.constant 0 : index
    %c0_0 = arith.constant 0 : index
    %c0_1 = arith.constant 0 : index
    %0 = vector.load %arg1[%c0, %c0_0, %c0_1] : memref<1x16x342xbf16, #tpu.memory_space<vmem>>, vector<1x16x342xbf16>
    %1 = vector.shape_cast %0 : vector<1x16x342xbf16> to vector<16x342xbf16>
    %2 = arith.extf %1 : vector<16x342xbf16> to vector<16x342xf32>
    %c0_2 = arith.constant 0 : index
    %c0_3 = arith.constant 0 : index
    %3 = vector.load %arg2[%c0_2, %c0_3] : memref<16x1xf32, #tpu.memory_space<vmem>>, vector<16x1xf32>
    %4 = vector.broadcast %3 : vector<16x1xf32> to vector<16x342xf32>
    %5 = arith.mulf %2, %4 : vector<16x342xf32>
    %c0_4 = arith.constant 0 : index
    %c0_5 = arith.constant 0 : index
    %6 = vector.load %arg3[%c0_4, %c0_5] : memref<16x1xf32, #tpu.memory_space<vmem>>, vector<16x1xf32>
    %7 = vector.broadcast %6 : vector<16x1xf32> to vector<16x342xf32>
    %8 = arith.addf %5, %7 : vector<16x342xf32>
    %cst = arith.constant 0.000000e+00 : f32
    %9 = vector.broadcast %cst : f32 to vector<16x342xf32>
    %10 = arith.maximumf %8, %9 : vector<16x342xf32>
    %c0_6 = arith.constant 0 : index
    %c0_7 = arith.constant 0 : index
    %11 = vector.load %arg6[%c0_6, %c0_7] : memref<1x342xf32, #tpu.memory_space<vmem>>, vector<1x342xf32>
    %12 = vector.broadcast %11 : vector<1x342xf32> to vector<16x342xf32>
    %13 = arith.mulf %10, %12 : vector<16x342xf32>
    %c0_8 = arith.constant 0 : index
    %c0_9 = arith.constant 0 : index
    %14 = vector.load %arg4[%c0_8, %c0_9] : memref<16x144xbf16, #tpu.memory_space<vmem>>, vector<16x144xbf16>
    %c0_10 = arith.constant 0 : index
    %c0_11 = arith.constant 0 : index
    %15 = vector.load %arg5[%c0_10, %c0_11] : memref<16x1xf32, #tpu.memory_space<vmem>>, vector<16x1xf32>
    %16 = arith.truncf %13 : vector<16x342xf32> to vector<16x342xbf16>
    %17 = vector.extract_strided_slice %16 {offsets = [0, 0], sizes = [16, 288], strides = [1, 1]} : vector<16x342xbf16> to vector<16x288xbf16>
    %18 = vector.extract_strided_slice %16 {offsets = [0, 1], sizes = [16, 288], strides = [1, 1]} : vector<16x342xbf16> to vector<16x288xbf16>
    %19 = vector.extract_strided_slice %16 {offsets = [0, 2], sizes = [16, 288], strides = [1, 1]} : vector<16x342xbf16> to vector<16x288xbf16>
    %20 = vector.extract_strided_slice %16 {offsets = [0, 18], sizes = [16, 288], strides = [1, 1]} : vector<16x342xbf16> to vector<16x288xbf16>
    %21 = vector.extract_strided_slice %16 {offsets = [0, 19], sizes = [16, 288], strides = [1, 1]} : vector<16x342xbf16> to vector<16x288xbf16>
    %22 = vector.extract_strided_slice %16 {offsets = [0, 20], sizes = [16, 288], strides = [1, 1]} : vector<16x342xbf16> to vector<16x288xbf16>
    %23 = vector.extract_strided_slice %16 {offsets = [0, 36], sizes = [16, 288], strides = [1, 1]} : vector<16x342xbf16> to vector<16x288xbf16>
    %24 = vector.extract_strided_slice %16 {offsets = [0, 37], sizes = [16, 288], strides = [1, 1]} : vector<16x342xbf16> to vector<16x288xbf16>
    %25 = vector.extract_strided_slice %16 {offsets = [0, 38], sizes = [16, 288], strides = [1, 1]} : vector<16x342xbf16> to vector<16x288xbf16>
    %26 = tpu.concatenate %17, %18, %19, %20, %21, %22, %23, %24, %25 in 0 : vector<16x288xbf16>, vector<16x288xbf16>, vector<16x288xbf16>, vector<16x288xbf16>, vector<16x288xbf16>, vector<16x288xbf16>, vector<16x288xbf16>, vector<16x288xbf16>, vector<16x288xbf16> -> vector<144x288xbf16>
    %cst_12 = arith.constant dense<0.000000e+00> : vector<16x288xf32>
    %27 = tpu.matmul %14, %26, %cst_12 {dimension_numbers = #tpu.dot_dimension_numbers<[1], [0], [0], [1], [0, 0, 1, 1], [], []>} : vector<16x144xbf16>, vector<144x288xbf16>, vector<16x288xf32> -> vector<16x288xf32>
    %28 = vector.broadcast %15 : vector<16x1xf32> to vector<16x288xf32>
    %29 = arith.addf %27, %28 : vector<16x288xf32>
    %30 = arith.truncf %29 : vector<16x288xf32> to vector<16x288xbf16>
    %c0_13 = arith.constant 0 : index
    %c0_14 = arith.constant 0 : index
    %c0_15 = arith.constant 0 : index
    %31 = vector.load %arg8[%c0_13, %c0_14, %c0_15] : memref<1x16x288xbf16, #tpu.memory_space<vmem>>, vector<1x16x288xbf16>
    %32 = vector.shape_cast %31 : vector<1x16x288xbf16> to vector<16x288xbf16>
    %33 = vector.shape_cast %30 : vector<16x288xbf16> to vector<1x16x288xbf16>
    tpu.vector_store %arg8[%c0_13, %c0_14, %c0_15], %33 {strides = array<i32>} : memref<1x16x288xbf16, #tpu.memory_space<vmem>>, vector<1x16x288xbf16>,
    %c0_16 = arith.constant 0 : index
    %c0_17 = arith.constant 0 : index
    %34 = vector.load %arg7[%c0_16, %c0_17] : memref<1x288xf32, #tpu.memory_space<vmem>>, vector<1x288xf32>
    %35 = vector.broadcast %34 : vector<1x288xf32> to vector<16x288xf32>
    %36 = arith.mulf %29, %35 : vector<16x288xf32>
    %cst_18 = arith.constant dense<0.000000e+00> : vector<16xf32>
    %37 = vector.multi_reduction <add>, %36, %cst_18 [1] : vector<16x288xf32> to vector<16xf32>
    %38 = vector.shape_cast %37 : vector<16xf32> to vector<16x1xf32>
    %c0_19 = arith.constant 0 : index
    %c0_20 = arith.constant 0 : index
    %c0_21 = arith.constant 0 : index
    %39 = vector.load %arg9[%c0_19, %c0_20, %c0_21] : memref<1x16x1xf32, #tpu.memory_space<vmem>>, vector<1x16x1xf32>
    %40 = vector.shape_cast %39 : vector<1x16x1xf32> to vector<16x1xf32>
    %41 = vector.shape_cast %38 : vector<16x1xf32> to vector<1x16x1xf32>
    tpu.vector_store %arg9[%c0_19, %c0_20, %c0_21], %41 {strides = array<i32>} : memref<1x16x1xf32, #tpu.memory_space<vmem>>, vector<1x16x1xf32>,
    %42 = arith.mulf %36, %29 : vector<16x288xf32>
    %cst_22 = arith.constant dense<0.000000e+00> : vector<16xf32>
    %43 = vector.multi_reduction <add>, %42, %cst_22 [1] : vector<16x288xf32> to vector<16xf32>
    %44 = vector.shape_cast %43 : vector<16xf32> to vector<16x1xf32>
    %c0_23 = arith.constant 0 : index
    %c0_24 = arith.constant 0 : index
    %c0_25 = arith.constant 0 : index
    %45 = vector.load %arg10[%c0_23, %c0_24, %c0_25] : memref<1x16x1xf32, #tpu.memory_space<vmem>>, vector<1x16x1xf32>
    %46 = vector.shape_cast %45 : vector<1x16x1xf32> to vector<16x1xf32>
    %47 = vector.shape_cast %44 : vector<16x1xf32> to vector<1x16x1xf32>
    tpu.vector_store %arg10[%c0_23, %c0_24, %c0_25], %47 {strides = array<i32>} : memref<1x16x1xf32, #tpu.memory_space<vmem>>, vector<1x16x1xf32>,
    return
  }
  func.func @transform_0(%arg0: i32) -> (i32, i32, i32) {
    %c0_i32 = arith.constant 0 : i32
    %c0_i32_0 = arith.constant 0 : i32
    %c0_i32_1 = arith.constant 0 : i32
    return %arg0, %c0_i32, %c0_i32_0 : i32, i32, i32
  }
  func.func @transform_1(%arg0: i32) -> (i32, i32) {
    %c0_i32 = arith.constant 0 : i32
    %c0_i32_0 = arith.constant 0 : i32
    %c0_i32_1 = arith.constant 0 : i32
    return %c0_i32, %c0_i32_0 : i32, i32
  }
  func.func @transform_2(%arg0: i32) -> (i32, i32) {
    %c0_i32 = arith.constant 0 : i32
    %c0_i32_0 = arith.constant 0 : i32
    %c0_i32_1 = arith.constant 0 : i32
    return %c0_i32, %c0_i32_0 : i32, i32
  }
  func.func @transform_3(%arg0: i32) -> (i32, i32) {
    %c0_i32 = arith.constant 0 : i32
    %c0_i32_0 = arith.constant 0 : i32
    %c0_i32_1 = arith.constant 0 : i32
    return %c0_i32, %c0_i32_0 : i32, i32
  }
  func.func @transform_4(%arg0: i32) -> (i32, i32) {
    %c0_i32 = arith.constant 0 : i32
    %c0_i32_0 = arith.constant 0 : i32
    %c0_i32_1 = arith.constant 0 : i32
    return %c0_i32, %c0_i32_0 : i32, i32
  }
  func.func @transform_5(%arg0: i32) -> (i32, i32) {
    %c0_i32 = arith.constant 0 : i32
    %c0_i32_0 = arith.constant 0 : i32
    %c0_i32_1 = arith.constant 0 : i32
    return %c0_i32, %c0_i32_0 : i32, i32
  }
  func.func @transform_6(%arg0: i32) -> (i32, i32) {
    %c0_i32 = arith.constant 0 : i32
    %c0_i32_0 = arith.constant 0 : i32
    %c0_i32_1 = arith.constant 0 : i32
    return %c0_i32, %c0_i32_0 : i32, i32
  }
  func.func @transform_7(%arg0: i32) -> (i32, i32, i32) {
    %c0_i32 = arith.constant 0 : i32
    %c0_i32_0 = arith.constant 0 : i32
    %c0_i32_1 = arith.constant 0 : i32
    return %arg0, %c0_i32, %c0_i32_0 : i32, i32, i32
  }
  func.func @transform_8(%arg0: i32) -> (i32, i32, i32) {
    %c0_i32 = arith.constant 0 : i32
    %c0_i32_0 = arith.constant 0 : i32
    %c0_i32_1 = arith.constant 0 : i32
    return %arg0, %c0_i32, %c0_i32_0 : i32, i32, i32
  }
  func.func @transform_9(%arg0: i32) -> (i32, i32, i32) {
    %c0_i32 = arith.constant 0 : i32
    %c0_i32_0 = arith.constant 0 : i32
    %c0_i32_1 = arith.constant 0 : i32
    return %arg0, %c0_i32, %c0_i32_0 : i32, i32, i32
  }
}

module attributes {stable_mosaic.version = 11 : i64} {
  func.func @_bn_relu_compact_kernel(%arg0: i32, %arg1: memref<1x16x16x18xbf16, #tpu.memory_space<vmem>>, %arg2: memref<16x1x1xf32, #tpu.memory_space<vmem>>, %arg3: memref<16x1x1xf32, #tpu.memory_space<vmem>>, %arg4: memref<1x16x16x16xf32, #tpu.memory_space<vmem>>) attributes {dimension_semantics = [#tpu.dimension_semantics<parallel>], iteration_bounds = array<i64: 2>, scalar_prefetch = 0 : i64, scratch_operands = 0 : i64, tpu.core_type = #tpu.core_type<tc>, window_params = [{transform_indices = @transform_0, window_bounds = array<i64: 1, 16, 16, 18>}, {pipeline_mode = #tpu.pipeline_mode<synchronous>, transform_indices = @transform_1, window_bounds = array<i64: 16, 1, 1>}, {pipeline_mode = #tpu.pipeline_mode<synchronous>, transform_indices = @transform_2, window_bounds = array<i64: 16, 1, 1>}, {transform_indices = @transform_3, window_bounds = array<i64: 1, 16, 16, 16>}]} {
    %c0 = arith.constant 0 : index
    %c0_0 = arith.constant 0 : index
    %c0_1 = arith.constant 0 : index
    %c0_2 = arith.constant 0 : index
    %0 = vector.load %arg1[%c0, %c0_0, %c0_1, %c0_2] : memref<1x16x16x18xbf16, #tpu.memory_space<vmem>>, vector<1x16x16x18xbf16>
    %1 = vector.shape_cast %0 : vector<1x16x16x18xbf16> to vector<16x16x18xbf16>
    %2 = arith.extf %1 : vector<16x16x18xbf16> to vector<16x16x18xf32>
    %c0_3 = arith.constant 0 : index
    %c0_4 = arith.constant 0 : index
    %c0_5 = arith.constant 0 : index
    %3 = vector.load %arg2[%c0_3, %c0_4, %c0_5] : memref<16x1x1xf32, #tpu.memory_space<vmem>>, vector<16x1x1xf32>
    %4 = vector.broadcast %3 : vector<16x1x1xf32> to vector<16x16x18xf32>
    %5 = arith.mulf %2, %4 : vector<16x16x18xf32>
    %c0_6 = arith.constant 0 : index
    %c0_7 = arith.constant 0 : index
    %c0_8 = arith.constant 0 : index
    %6 = vector.load %arg3[%c0_6, %c0_7, %c0_8] : memref<16x1x1xf32, #tpu.memory_space<vmem>>, vector<16x1x1xf32>
    %7 = vector.broadcast %6 : vector<16x1x1xf32> to vector<16x16x18xf32>
    %8 = arith.addf %5, %7 : vector<16x16x18xf32>
    %cst = arith.constant 0.000000e+00 : f32
    %9 = vector.broadcast %cst : f32 to vector<16x16x18xf32>
    %10 = arith.maximumf %8, %9 : vector<16x16x18xf32>
    %11 = vector.extract_strided_slice %10 {offsets = [0, 0, 0], sizes = [16, 16, 16], strides = [1, 1, 1]} : vector<16x16x18xf32> to vector<16x16x16xf32>
    %c0_9 = arith.constant 0 : index
    %c0_10 = arith.constant 0 : index
    %c0_11 = arith.constant 0 : index
    %c0_12 = arith.constant 0 : index
    %12 = vector.load %arg4[%c0_9, %c0_10, %c0_11, %c0_12] : memref<1x16x16x16xf32, #tpu.memory_space<vmem>>, vector<1x16x16x16xf32>
    %13 = vector.shape_cast %12 : vector<1x16x16x16xf32> to vector<16x16x16xf32>
    %14 = vector.shape_cast %11 : vector<16x16x16xf32> to vector<1x16x16x16xf32>
    tpu.vector_store %arg4[%c0_9, %c0_10, %c0_11, %c0_12], %14 {strides = array<i32>} : memref<1x16x16x16xf32, #tpu.memory_space<vmem>>, vector<1x16x16x16xf32>,
    return
  }
  func.func @transform_0(%arg0: i32) -> (i32, i32, i32, i32) {
    %c0_i32 = arith.constant 0 : i32
    %c0_i32_0 = arith.constant 0 : i32
    %c0_i32_1 = arith.constant 0 : i32
    %c0_i32_2 = arith.constant 0 : i32
    return %arg0, %c0_i32, %c0_i32_0, %c0_i32_1 : i32, i32, i32, i32
  }
  func.func @transform_1(%arg0: i32) -> (i32, i32, i32) {
    %c0_i32 = arith.constant 0 : i32
    %c0_i32_0 = arith.constant 0 : i32
    %c0_i32_1 = arith.constant 0 : i32
    %c0_i32_2 = arith.constant 0 : i32
    return %c0_i32, %c0_i32_0, %c0_i32_1 : i32, i32, i32
  }
  func.func @transform_2(%arg0: i32) -> (i32, i32, i32) {
    %c0_i32 = arith.constant 0 : i32
    %c0_i32_0 = arith.constant 0 : i32
    %c0_i32_1 = arith.constant 0 : i32
    %c0_i32_2 = arith.constant 0 : i32
    return %c0_i32, %c0_i32_0, %c0_i32_1 : i32, i32, i32
  }
  func.func @transform_3(%arg0: i32) -> (i32, i32, i32, i32) {
    %c0_i32 = arith.constant 0 : i32
    %c0_i32_0 = arith.constant 0 : i32
    %c0_i32_1 = arith.constant 0 : i32
    %c0_i32_2 = arith.constant 0 : i32
    return %arg0, %c0_i32, %c0_i32_0, %c0_i32_1 : i32, i32, i32, i32
  }
}

</mosaic_0001>

<llo_original>
// kernel: double_conv.3
$region0: #{double_conv.3}
  #allocation0 [shape = 'u32[]', space=smem, size = 0x4, offset = 0x4, fixed_abs, tag = 'smem constant byte address 0x4 - core index']
  #allocation1 [shape = 'u32[144,128]{1,0:T(1,128)}', space=vmem, size = 0x12000, scoped, tag = 'internal scratch']
  %s0 = inlined_call_operand.vmem [shape: bf16[2,16,380], index: 0, kind: input, shape index: {}]
  %s1 = inlined_call_operand.vmem [shape: bf16[16,144], index: 1, kind: input, shape index: {}]
  %s2 = inlined_call_operand.vmem [shape: f32[16,1], index: 2, kind: input, shape index: {}]
  %s3 = inlined_call_operand.vmem [shape: f32[1,342], index: 3, kind: input, shape index: {}]
  %s4 = inlined_call_operand.vmem [shape: bf16[2,16,342], index: 4, kind: output, shape index: {0}]
  %s5 = inlined_call_operand.vmem [shape: f32[2,16,1], index: 5, kind: output, shape index: {1}]
  %s6 = inlined_call_operand.vmem [shape: f32[2,16,1], index: 6, kind: output, shape index: {2}]
  %7 = xla_tuple %s4, %s5, %s6
  %s8 = sld [smem:[#allocation0]]
  $region65: #{double_conv.3} parent=0
    _
  %s10 = ssub.s32 1, %s8
  %s11 = scalar_select 0, %s10, %s8
  loop: start=0, step=1, limit=4
  $region2: #{double_conv.3} parent=0 // loop_pre_header
    _
  $region3: #{double_conv.3} parent=0 // loop_header
    %s13 = sphi 0, %s17
    %p14 = scmp.ge.s32.totalorder %s13, 4
    %s23 = sphi 0, %s25
    %s26 = sphi 0, %s23
    %s27 = sphi 0, %s26
    %s43 = sphi 0, %s27
    %s47 = sphi 0, %s47
    %s49 = sphi 0, %s47
    %s50 = sphi 0, %s49
    %s64 = sphi 0, %s50
    %s68 = sphi 0, %s68
    %s70 = sphi 0, %s68
    %s71 = sphi 0, %s70
    %s85 = sphi 0, %s71
    %s89 = sphi 0, %s89
    %s91 = sphi 0, %s89
    %s92 = sphi 0, %s91
    %s106 = sphi 0, %s92
    %s112 = sphi 0, %s114
    %s115 = sphi 0, %s112
    %s116 = sphi 0, %s115
    %s132 = sphi 0, %s116
    %s138 = sphi 0, %s140
    %s141 = sphi 0, %s138
    %s142 = sphi 0, %s141
    %s158 = sphi 0, %s142
    %s164 = sphi 0, %s166
    %s167 = sphi 0, %s164
    %s168 = sphi 0, %s167
    %s184 = sphi 0, %s168
  $region4: #{double_conv.3} parent=0 // loop_header_branch
    %16 = sbr.rel (%p14) target = $region8
  $region5: #{double_conv.3} parent=0 // loop_body
    %s18 = ssub.s32 %s13, 1
    %s19 = ssub.s32 %s13, 2
    %s20 = sadd.s32 %s13, 1
    %s21 = ssub.s32 %s13, %s20
    %p22 = scmp.eq.s32.totalorder %s21, 0
    %s24 = sadd.s32 %s23, 1
    %s25 = scalar_select %p22, %s23, %s24
    %p28 = pneg %p22
    %p29 = scmp.eq.s32.totalorder %s13, 1
    %p30 = por %p28, %p29
    %p31 = scmp.ne.s32.totalorder %s23, %s26
    %p32 = scmp.eq.s32.totalorder %s13, 0
    %p33 = por %p31, %p32
    %p34 = scmp.ne.s32.totalorder %s23, %s26
    %p35 = scmp.eq.s32.totalorder %s18, 1
    %p36 = por %p34, %p35
    %p37 = scmp.ne.s32.totalorder %s26, %s27
    %p38 = scmp.eq.s32.totalorder %s18, 0
    %p39 = por %p37, %p38
    %p40 = scmp.ne.s32.totalorder %s26, %s27
    %p41 = scmp.eq.s32.totalorder %s19, 1
    %p42 = por %p40, %p41
    %p44 = scmp.ne.s32.totalorder %s27, %s43
    %p45 = scmp.eq.s32.totalorder %s19, 0
    %p46 = por %p44, %p45
    %s48 = sadd.s32 %s47, 1
    %p51 = scmp.eq.s32.totalorder %s13, 1
    %p52 = scmp.ne.s32.totalorder %s47, %s49
    %p53 = scmp.eq.s32.totalorder %s13, 0
    %p54 = por %p52, %p53
    %p55 = scmp.ne.s32.totalorder %s47, %s49
    %p56 = scmp.eq.s32.totalorder %s18, 1
    %p57 = por %p55, %p56
    %p58 = scmp.ne.s32.totalorder %s49, %s50
    %p59 = scmp.eq.s32.totalorder %s18, 0
    %p60 = por %p58, %p59
    %p61 = scmp.ne.s32.totalorder %s49, %s50
    %p62 = scmp.eq.s32.totalorder %s19, 1
    %p63 = por %p61, %p62
    %p65 = scmp.ne.s32.totalorder %s50, %s64
    %p66 = scmp.eq.s32.totalorder %s19, 0
    %p67 = por %p65, %p66
    %s69 = sadd.s32 %s68, 1
    %p72 = scmp.eq.s32.totalorder %s13, 1
    %p73 = scmp.ne.s32.totalorder %s68, %s70
    %p74 = scmp.eq.s32.totalorder %s13, 0
    %p75 = por %p73, %p74
    %p76 = scmp.ne.s32.totalorder %s68, %s70
    %p77 = scmp.eq.s32.totalorder %s18, 1
    %p78 = por %p76, %p77
    %p79 = scmp.ne.s32.totalorder %s70, %s71
    %p80 = scmp.eq.s32.totalorder %s18, 0
    %p81 = por %p79, %p80
    %p82 = scmp.ne.s32.totalorder %s70, %s71
    %p83 = scmp.eq.s32.totalorder %s19, 1
    %p84 = por %p82, %p83
    %p86 = scmp.ne.s32.totalorder %s71, %s85
    %p87 = scmp.eq.s32.totalorder %s19, 0
    %p88 = por %p86, %p87
    %s90 = sadd.s32 %s89, 1
    %p93 = scmp.eq.s32.totalorder %s13, 1
    %p94 = scmp.ne.s32.totalorder %s89, %s91
    %p95 = scmp.eq.s32.totalorder %s13, 0
    %p96 = por %p94, %p95
    %p97 = scmp.ne.s32.totalorder %s89, %s91
    %p98 = scmp.eq.s32.totalorder %s18, 1
    %p99 = por %p97, %p98
    %p100 = scmp.ne.s32.totalorder %s91, %s92
    %p101 = scmp.eq.s32.totalorder %s18, 0
    %p102 = por %p100, %p101
    %p103 = scmp.ne.s32.totalorder %s91, %s92
    %p104 = scmp.eq.s32.totalorder %s19, 1
    %p105 = por %p103, %p104
    %p107 = scmp.ne.s32.totalorder %s92, %s106
    %p108 = scmp.eq.s32.totalorder %s19, 0
    %p109 = por %p107, %p108
    %s110 = ssub.s32 %s13, %s20
    %p111 = scmp.eq.s32.totalorder %s110, 0
    %s113 = sadd.s32 %s112, 1
    %s114 = scalar_select %p111, %s112, %s113
    %p117 = pneg %p111
    %p118 = scmp.eq.s32.totalorder %s13, 1
    %p119 = por %p117, %p118
    %p120 = scmp.ne.s32.totalorder %s112, %s115
    %p121 = scmp.eq.s32.totalorder %s13, 0
    %p122 = por %p120, %p121
    %p123 = scmp.ne.s32.totalorder %s112, %s115
    %p124 = scmp.eq.s32.totalorder %s18, 1
    %p125 = por %p123, %p124
    %p126 = scmp.ne.s32.totalorder %s115, %s116
    %p127 = scmp.eq.s32.totalorder %s18, 0
    %p128 = por %p126, %p127
    %p129 = scmp.ne.s32.totalorder %s115, %s116
    %p130 = scmp.eq.s32.totalorder %s19, 1
    %p131 = por %p129, %p130
    %p133 = scmp.ne.s32.totalorder %s116, %s132
    %p134 = scmp.eq.s32.totalorder %s19, 0
    %p135 = por %p133, %p134
    %s136 = ssub.s32 %s13, %s20
    %p137 = scmp.eq.s32.totalorder %s136, 0
    %s139 = sadd.s32 %s138, 1
    %s140 = scalar_select %p137, %s138, %s139
    %p143 = pneg %p137
    %p144 = scmp.eq.s32.totalorder %s13, 1
    %p145 = por %p143, %p144
    %p146 = scmp.ne.s32.totalorder %s138, %s141
    %p147 = scmp.eq.s32.totalorder %s13, 0
    %p148 = por %p146, %p147
    %p149 = scmp.ne.s32.totalorder %s138, %s141
    %p150 = scmp.eq.s32.totalorder %s18, 1
    %p151 = por %p149, %p150
    %p152 = scmp.ne.s32.totalorder %s141, %s142
    %p153 = scmp.eq.s32.totalorder %s18, 0
    %p154 = por %p152, %p153
    %p155 = scmp.ne.s32.totalorder %s141, %s142
    %p156 = scmp.eq.s32.totalorder %s19, 1
    %p157 = por %p155, %p156
    %p159 = scmp.ne.s32.totalorder %s142, %s158
    %p160 = scmp.eq.s32.totalorder %s19, 0
    %p161 = por %p159, %p160
    %s162 = ssub.s32 %s13, %s20
    %p163 = scmp.eq.s32.totalorder %s162, 0
    %s165 = sadd.s32 %s164, 1
    %s166 = scalar_select %p163, %s164, %s165
    %p169 = pneg %p163
    %p170 = scmp.eq.s32.totalorder %s13, 1
    %p171 = por %p169, %p170
    %p172 = scmp.ne.s32.totalorder %s164, %s167
    %p173 = scmp.eq.s32.totalorder %s13, 0
    %p174 = por %p172, %p173
    %p175 = scmp.ne.s32.totalorder %s164, %s167
    %p176 = scmp.eq.s32.totalorder %s18, 1
    %p177 = por %p175, %p176
    %p178 = scmp.ne.s32.totalorder %s167, %s168
    %p179 = scmp.eq.s32.totalorder %s18, 0
    %p180 = por %p178, %p179
    %p181 = scmp.ne.s32.totalorder %s167, %s168
    %p182 = scmp.eq.s32.totalorder %s19, 1
    %p183 = por %p181, %p182
    %p185 = scmp.ne.s32.totalorder %s168, %s184
    %p186 = scmp.eq.s32.totalorder %s19, 0
    %p187 = por %p185, %p186
    %p188 = scmp.le.s32.totalorder 1, %s13
    %p189 = scmp.lt.s32.totalorder %s13, 3
    %p190 = pnand %p188, %p189
    %p191 = pneg %p190
    // Predicated region
    $region9: #{double_conv.3} parent=5 // pred_check
      _
    $region10: #{double_conv.3} parent=5 // pred_check_branch
      %193 = sbr.rel (%p190) target = $region12
    $region11: #{double_conv.3} parent=5 // pred_region
      %s194 = ssub.s32 %s13, 1
      // Predicated region
      $region13: #{double_conv.3} parent=11 // pred_check
        %p195 = pneg %p60
      $region14: #{double_conv.3} parent=11 // pred_check_branch
        %197 = sbr.rel (%p195) target = $region16
      $region15: #{double_conv.3} parent=11 // pred_region
        _
      $region16: #{double_conv.3} parent=11 // pred_fallthru
        _
      // Predicated region
      $region17: #{double_conv.3} parent=11 // pred_check
        %p198 = pneg %p81
      $region18: #{double_conv.3} parent=11 // pred_check_branch
        %200 = sbr.rel (%p198) target = $region20
      $region19: #{double_conv.3} parent=11 // pred_region
        _
      $region20: #{double_conv.3} parent=11 // pred_fallthru
        _
      // Predicated region
      $region21: #{double_conv.3} parent=11 // pred_check
        %p201 = pneg %p102
      $region22: #{double_conv.3} parent=11 // pred_check_branch
        %203 = sbr.rel (%p201) target = $region24
      $region23: #{double_conv.3} parent=11 // pred_region
        _
      $region24: #{double_conv.3} parent=11 // pred_fallthru
        _
    $region12: #{double_conv.3} parent=5 // pred_fallthru
      _
    %p204 = scmp.lt.s32.totalorder %s13, 2
    // Predicated region
    $region25: #{double_conv.3} parent=5 // pred_check
      %p205 = pneg %p204
    $region26: #{double_conv.3} parent=5 // pred_check_branch
      %207 = sbr.rel (%p205) target = $region28
    $region27: #{double_conv.3} parent=5 // pred_region
      // Predicated region
      $region29: #{double_conv.3} parent=27 // pred_check
        %p208 = pneg %p33
      $region30: #{double_conv.3} parent=27 // pred_check_branch
        %210 = sbr.rel (%p208) target = $region32
      $region31: #{double_conv.3} parent=27 // pred_region
        %p211 = scmp.lt.s32.totalorder %s13, 1
        %s212 = scalar_select %p211, %s13, 1
        %s213 = smul.addr %s212, 6
        %s214 = smul.addr %s213, 4
        %s215 = scalar_lea.vmem %s0, %s214
      $region32: #{double_conv.3} parent=27 // pred_fallthru
        _
    $region28: #{double_conv.3} parent=5 // pred_fallthru
      _
    %p216 = scmp.le.s32.totalorder 1, %s13
    %p217 = scmp.lt.s32.totalorder %s13, 3
    %p218 = pnand %p216, %p217
    %p219 = pneg %p218
    // Predicated region
    $region33: #{double_conv.3} parent=5 // pred_check
      _
    $region34: #{double_conv.3} parent=5 // pred_check_branch
      %221 = sbr.rel (%p218) target = $region36
    $region35: #{double_conv.3} parent=5 // pred_region
      %s222 = ssub.s32 %s13, 1
      %p223 = scmp.lt.s32.totalorder %s18, 1
      %s224 = scalar_select %p223, %s18, 1
      %s225 = smul.addr %s224, 6
      %s226 = smul.addr %s225, 4
      %s227 = scalar_lea.vmem %s0, %s226
      %p228 = pneg %p39
      %p229 = pneg %p36
      %p230 = pneg %p60
      %p231 = pneg %p57
      %p232 = pneg %p81
      %p233 = pneg %p78
      %p234 = pneg %p102
      %p235 = pneg %p99
      %p236 = pneg %p128
      %p237 = pneg %p125
      %p238 = scmp.lt.s32.totalorder %s18, 1
      %s239 = scalar_select %p238, %s18, 1
      %s240 = smul.addr %s239, 6
      %s241 = smul.addr %s240, 4
      %s242 = scalar_lea.vmem %s4, %s241
      %p243 = pneg %p154
      %p244 = pneg %p151
      %p245 = scmp.lt.s32.totalorder %s18, 1
      %s246 = scalar_select %p245, %s18, 1
      %s247 = smul.addr %s246, 2
      %s248 = smul.addr %s247, 8
      %s249 = scalar_lea.vmem %s5, %s248
      %p250 = pneg %p180
      %p251 = pneg %p177
      %p252 = scmp.lt.s32.totalorder %s18, 1
      %s253 = scalar_select %p252, %s18, 1
      %s254 = smul.addr %s253, 2
      %s255 = smul.addr %s254, 8
      %s256 = scalar_lea.vmem %s6, %s255
      %p257 = scmp.lt.s32.totalorder %s18, 1
      %s258 = scalar_select %p257, %s18, 1
      %s259 = smul.addr %s258, 6
      %s260 = smul.addr %s259, 4
      %s261 = scalar_lea.vmem %s0, %s260
      %p262 = scmp.lt.s32.totalorder %s18, 1
      %s263 = scalar_select %p262, %s18, 1
      %s264 = smul.addr %s263, 6
      %s265 = smul.addr %s264, 4
      %s266 = scalar_lea.vmem %s4, %s265
      %p267 = scmp.lt.s32.totalorder %s18, 1
      %s268 = scalar_select %p267, %s18, 1
      %s269 = smul.addr %s268, 2
      %s270 = smul.addr %s269, 8
      %s271 = scalar_lea.vmem %s5, %s270
      %p272 = scmp.lt.s32.totalorder %s18, 1
      %s273 = scalar_select %p272, %s18, 1
      %s274 = smul.addr %s273, 2
      %s275 = smul.addr %s274, 8
      %s276 = scalar_lea.vmem %s6, %s275
      %v278 = vld [vmem:[%s261] sm:$0xff]
      %v279 = vld [vmem:[%s261 + $0x8] sm:$0xf]
      %v280 = vld [vmem:[%s261 + $0xc] sm:$0xff]
      %v281 = vld [vmem:[%s261 + $0x14] sm:$0xf]
      %v282 = vld [vmem:[%s1] sm:$0xff]
      %v283 = vld [vmem:[%s1 + $0x8] sm:$0xff]
      %v284 = vld [vmem:[%s2] sm:$0xff]
      %v285 = vld [vmem:[%s2 + $0x8] sm:$0xff]
      %v290 = vunpack.c.l.b16 %v278
      %v291 = vunpack.c.h.b16 %v278
      %v292 = vunpack.c.l.b16 %v279
      %v293 = vunpack.c.l.b16 %v280
      %v294 = vunpack.c.h.b16 %v280
      %v295 = vunpack.c.l.b16 %v281
      %v296 = vpack.c.b16 %v293, %v290
      %v297 = vpack.c.b16 %v294, %v291
      %v298 = vpack.c.b16 %v295, %v292
      %302 = vrot.lane.b32.xlu0 %v296, 127
      %v303 = vpop.permute.xlu0 %302
      %304 = vrot.lane.b32.xlu0 %v297, 127
      %v305 = vpop.permute.xlu0 %304
      %306 = vrot.lane.b32.xlu0 %v298, 127
      %v307 = vpop.permute.xlu0 %306
      %vm308 = vcmask 1039360
      %v309 = vsel %vm308, %v303, %v305
      %v310 = vsel %vm308, %v305, %v307
      %314 = vrot.lane.b32.xlu0 %v296, 126
      %v315 = vpop.permute.xlu0 %314
      %316 = vrot.lane.b32.xlu0 %v297, 126
      %v317 = vpop.permute.xlu0 %316
      %318 = vrot.lane.b32.xlu0 %v298, 126
      %v319 = vpop.permute.xlu0 %318
      %vm320 = vcmask 1031168
      %v321 = vsel %vm320, %v315, %v317
      %v322 = vsel %vm320, %v317, %v319
      %326 = vrot.lane.b32.xlu0 %v296, 110
      %v327 = vpop.permute.xlu0 %326
      %328 = vrot.lane.b32.xlu0 %v297, 110
      %v329 = vpop.permute.xlu0 %328
      %330 = vrot.lane.b32.xlu0 %v298, 110
      %v331 = vpop.permute.xlu0 %330
      %vm332 = vcmask 900096
      %v333 = vsel %vm332, %v327, %v329
      %v334 = vsel %vm332, %v329, %v331
      %338 = vrot.lane.b32.xlu0 %v296, 109
      %v339 = vpop.permute.xlu0 %338
      %340 = vrot.lane.b32.xlu0 %v297, 109
      %v341 = vpop.permute.xlu0 %340
      %342 = vrot.lane.b32.xlu0 %v298, 109
      %v343 = vpop.permute.xlu0 %342
      %vm344 = vcmask 891904
      %v345 = vsel %vm344, %v339, %v341
      %v346 = vsel %vm344, %v341, %v343
      %350 = vrot.lane.b32.xlu0 %v296, 108
      %v351 = vpop.permute.xlu0 %350
      %352 = vrot.lane.b32.xlu0 %v297, 108
      %v353 = vpop.permute.xlu0 %352
      %354 = vrot.lane.b32.xlu0 %v298, 108
      %v355 = vpop.permute.xlu0 %354
      %vm356 = vcmask 883712
      %v357 = vsel %vm356, %v351, %v353
      %v358 = vsel %vm356, %v353, %v355
      %362 = vrot.lane.b32.xlu0 %v296, 92
      %v363 = vpop.permute.xlu0 %362
      %364 = vrot.lane.b32.xlu0 %v297, 92
      %v365 = vpop.permute.xlu0 %364
      %366 = vrot.lane.b32.xlu0 %v298, 92
      %v367 = vpop.permute.xlu0 %366
      %vm368 = vcmask 752640
      %v369 = vsel %vm368, %v363, %v365
      %v370 = vsel %vm368, %v365, %v367
      %374 = vrot.lane.b32.xlu0 %v296, 91
      %v375 = vpop.permute.xlu0 %374
      %376 = vrot.lane.b32.xlu0 %v297, 91
      %v377 = vpop.permute.xlu0 %376
      %378 = vrot.lane.b32.xlu0 %v298, 91
      %v379 = vpop.permute.xlu0 %378
      %vm380 = vcmask 744448
      %v381 = vsel %vm380, %v375, %v377
      %v382 = vsel %vm380, %v377, %v379
      %386 = vrot.lane.b32.xlu0 %v296, 90
      %v387 = vpop.permute.xlu0 %386
      %388 = vrot.lane.b32.xlu0 %v297, 90
      %v389 = vpop.permute.xlu0 %388
      %390 = vrot.lane.b32.xlu0 %v298, 90
      %v391 = vpop.permute.xlu0 %390
      %vm392 = vcmask 736256
      %v393 = vsel %vm392, %v387, %v389
      %v394 = vsel %vm392, %v389, %v391
      %399 = vset.pattern.permute.xlu0 0
      %400 = vperm.xlu0 %399, %v284
      %v401 = vpop.permute.xlu0 %400
      %404 = vset.pattern.permute.xlu0 0
      %405 = vperm.xlu0 %404, %v285
      %v406 = vpop.permute.xlu0 %405
      %v410 = vunpack.c.l.b16 %v282
      %v411 = vunpack.c.h.b16 %v282
      %v412 = vunpack.c.l.b16 %v283
      %v413 = vunpack.c.h.b16 %v283
      %v414 = vpack.c.b16 %v412, %v410
      %v415 = vpack.c.b16 %v413, %v411
      %vm417 = vcmask 130048
      %v419 = vsel %vm417, %v415, 0
      %421 = vmatprep.subr.bf16.mxu0 %v297
      %422 = vmatpush1.bf16.msra.mxu0 %v296
      %423 = vmatprep.subr.bf16.mxu0 %v310
      %424 = vmatpush1.bf16.msra.mxu0 %v309
      %425 = vmatprep.subr.bf16.mxu0 %v322
      %426 = vmatpush1.bf16.msra.mxu0 %v321
      %427 = vmatprep.subr.bf16.mxu0 %v334
      %428 = vmatpush1.bf16.msra.mxu0 %v333
      %429 = vmatprep.subr.bf16.mxu0 %v346
      %430 = vmatpush1.bf16.msra.mxu0 %v345
      %431 = vmatprep.subr.bf16.mxu0 %v358
      %432 = vmatpush1.bf16.msra.mxu0 %v357
      %433 = vmatprep.subr.bf16.mxu0 %v370
      %434 = vmatpush1.bf16.msra.mxu0 %v369
      %435 = vmatprep.subr.bf16.mxu0 %v382
      %436 = vmatpush1.bf16.msra.mxu0 %v381
      %437 = vmatprep.subr.bf16.mxu0 %v394
      %438 = vmatpush1.bf16.msra.mxu0 %v393
      %439 = vmatprep.subr.bf16.mxu0 0
      %440 = vmatpush1.bf16.msra.mxu0 0
      %441 = vmatprep.subr.bf16.mxu0 0
      %442 = vmatpush1.bf16.msra.mxu0 0
      %443 = vmatprep.subr.bf16.mxu0 0
      %444 = vmatpush1.bf16.msra.mxu0 0
      %445 = vmatprep.subr.bf16.mxu0 0
      %446 = vmatpush1.bf16.msra.mxu0 0
      %447 = vmatprep.subr.bf16.mxu0 0
      %448 = vmatpush1.bf16.msra.mxu0 0
      %449 = vmatprep.subr.bf16.mxu0 0
      %450 = vmatpush1.bf16.msra.mxu0 0
      %451 = vmatprep.subr.bf16.mxu0 0
      %452 = vmatpush1.bf16.msra.mxu0 0
      %453 = vmatprep.mubr.bf16.mxu0 %v419
      %454 = vmatmul.mubr.bf16.gmra.mrb[0].mxu0 %v414
      %v455 = vpop.f32.mrb[0].mxu0
      %v456 = vadd.f32 %v401, %v455
      %v457 = vpop.f32.mrb[0].mxu0
      %v458 = vadd.f32 %v401, %v457
      %v459 = vpop.f32.mrb[0].mxu0
      %v460 = vadd.f32 %v406, %v459
      %v461 = vpop.f32.mrb[0].mxu0
      %v462 = vadd.f32 %v406, %v461
      %463 = vdwg.mxu0
      %464 = vmatprep.subr.bf16.mxu0 0
      %465 = vmatpush1.bf16.msra.mxu0 %v298
      %466 = vmatprep.subr.bf16.mxu0 0
      %467 = vmatpush1.bf16.msra.mxu0 %v307
      %468 = vmatprep.subr.bf16.mxu0 0
      %469 = vmatpush1.bf16.msra.mxu0 %v319
      %470 = vmatprep.subr.bf16.mxu0 0
      %471 = vmatpush1.bf16.msra.mxu0 %v331
      %472 = vmatprep.subr.bf16.mxu0 0
      %473 = vmatpush1.bf16.msra.mxu0 %v343
      %474 = vmatprep.subr.bf16.mxu0 0
      %475 = vmatpush1.bf16.msra.mxu0 %v355
      %476 = vmatprep.subr.bf16.mxu0 0
      %477 = vmatpush1.bf16.msra.mxu0 %v367
      %478 = vmatprep.subr.bf16.mxu0 0
      %479 = vmatpush1.bf16.msra.mxu0 %v379
      %480 = vmatprep.subr.bf16.mxu0 0
      %481 = vmatpush1.bf16.msra.mxu0 %v391
      %482 = vmatprep.subr.bf16.mxu0 0
      %483 = vmatpush1.bf16.msra.mxu0 0
      %484 = vmatprep.subr.bf16.mxu0 0
      %485 = vmatpush1.bf16.msra.mxu0 0
      %486 = vmatprep.subr.bf16.mxu0 0
      %487 = vmatpush1.bf16.msra.mxu0 0
      %488 = vmatprep.subr.bf16.mxu0 0
      %489 = vmatpush1.bf16.msra.mxu0 0
      %490 = vmatprep.subr.bf16.mxu0 0
      %491 = vmatpush1.bf16.msra.mxu0 0
      %492 = vmatprep.subr.bf16.mxu0 0
      %493 = vmatpush1.bf16.msra.mxu0 0
      %494 = vmatprep.subr.bf16.mxu0 0
      %495 = vmatpush1.bf16.msra.mxu0 0
      %496 = vmatprep.mubr.bf16.mxu0 %v419
      %497 = vmatmul.mubr.bf16.gmra.mrb[0].mxu0 %v414
      %v498 = vpop.f32.mrb[0].mxu0
      %v499 = vadd.f32 %v401, %v498
      %v500 = vpop.f32.mrb[0].mxu0
      %v501 = vpop.f32.mrb[0].mxu0
      %v502 = vadd.f32 %v406, %v501
      %v503 = vpop.f32.mrb[0].mxu0
      %504 = vdwg.mxu0
      %v505 = vpack.c.bf16 %v460, %v456
      %v506 = vpack.c.bf16 %v462, %v458
      %v507 = vpack.c.bf16 %v502, %v499
      %v511 = vunpack.c.l.b16 %v505
      %v512 = vunpack.c.l.b16 %v506
      %v513 = vunpack.c.l.b16 %v507
      %v514 = vunpack.c.h.b16 %v505
      %v515 = vunpack.c.h.b16 %v506
      %v516 = vunpack.c.h.b16 %v507
      %v517 = vpack.c.b16 %v512, %v511
      %v518 = vpack.c.b16 %v513, %v513
      %v519 = vpack.c.b16 %v515, %v514
      %v520 = vpack.c.b16 %v516, %v516
      %525 = vst [vmem:[%s266] sm:$0xff] %v517
      %vm526 = vcmask 699392
      %527 = vst.msk [vmem:[%s266 + $0x8] sm:$0xf] %vm526, %v518
      %528 = vst [vmem:[%s266 + $0xc] sm:$0xff] %v519
      %529 = vst.msk [vmem:[%s266 + $0x14] sm:$0xf] %vm526, %v520
      %v530 = vld [vmem:[%s3] sm:$0x7]
      %v532 = vlaneseq
      %v533 = vshrl.u32 %v532, 7
      %v534 = vsub.s32 0, %v533
      %v535 = vrot.slane %v530, %v534
      %v536 = vlaneseq
      %v537 = vshrl.u32 %v536, 7
      %v538 = vsub.s32 1, %v537
      %v539 = vrot.slane %v530, %v538
      %v540 = vlaneseq
      %v541 = vshrl.u32 %v540, 7
      %v542 = vsub.s32 2, %v541
      %v543 = vrot.slane %v530, %v542
      %v547 = vmul.f32 %v456, %v535
      %v548 = vmul.f32 %v458, %v539
      %v549 = vmul.f32 %v499, %v543
      %v550 = vmul.f32 %v460, %v535
      %v551 = vmul.f32 %v462, %v539
      %v552 = vmul.f32 %v502, %v543
      %v553 = vadd.f32 %v547, %v548
      %vm554 = vcmask 703488
      %v555 = vsel %vm554, %v549, 0.0
      %v556 = vadd.f32 %v553, %v555
      %557 = vadd.xlane.f32.xlu0 %v556
      %v558 = vpop.xlane.xlu0 %557
      %v559 = vadd.f32 %v550, %v551
      %v560 = vsel %vm554, %v552, 0.0
      %v561 = vadd.f32 %v559, %v560
      %562 = vadd.xlane.f32.xlu0 %v561
      %v563 = vpop.xlane.xlu0 %562
      %vm564 = vcmask 7168
      %565 = vst.msk [vmem:[%s271] sm:$0xff] %vm564, %v558
      %566 = vst.msk [vmem:[%s271 + $0x8] sm:$0xff] %vm564, %v563
      %v567 = vmul.f32 %v547, %v456
      %v568 = vmul.f32 %v548, %v458
      %v569 = vmul.f32 %v549, %v499
      %v570 = vmul.f32 %v550, %v460
      %v571 = vmul.f32 %v551, %v462
      %v572 = vmul.f32 %v552, %v502
      %v573 = vadd.f32 %v567, %v568
      %v574 = vsel %vm554, %v569, 0.0
      %v575 = vadd.f32 %v573, %v574
      %576 = vadd.xlane.f32.xlu0 %v575
      %v577 = vpop.xlane.xlu0 %576
      %v578 = vadd.f32 %v570, %v571
      %v579 = vsel %vm554, %v572, 0.0
      %v580 = vadd.f32 %v578, %v579
      %581 = vadd.xlane.f32.xlu0 %v580
      %v582 = vpop.xlane.xlu0 %581
      %583 = vst.msk [vmem:[%s276] sm:$0xff] %vm564, %v577
      %584 = vst.msk [vmem:[%s276 + $0x8] sm:$0xff] %vm564, %v582
      %p585 = scmp.lt.s32.totalorder %s18, 1
      %s586 = scalar_select %p585, %s18, 1
      %s587 = smul.addr %s586, 6
      %s588 = smul.addr %s587, 4
      %s589 = scalar_lea.vmem %s4, %s588
      %p590 = scmp.lt.s32.totalorder %s18, 1
      %s591 = scalar_select %p590, %s18, 1
      %s592 = smul.addr %s591, 2
      %s593 = smul.addr %s592, 8
      %s594 = scalar_lea.vmem %s5, %s593
      %p595 = scmp.lt.s32.totalorder %s18, 1
      %s596 = scalar_select %p595, %s18, 1
      %s597 = smul.addr %s596, 2
      %s598 = smul.addr %s597, 8
      %s599 = scalar_lea.vmem %s6, %s598
      // Predicated region
      $region37: #{double_conv.3} parent=35 // pred_check
        %p600 = pneg %p125
      $region38: #{double_conv.3} parent=35 // pred_check_branch
        %602 = sbr.rel (%p600) target = $region40
      $region39: #{double_conv.3} parent=35 // pred_region
        _
      $region40: #{double_conv.3} parent=35 // pred_fallthru
        _
      // Predicated region
      $region41: #{double_conv.3} parent=35 // pred_check
        %p603 = pneg %p151
      $region42: #{double_conv.3} parent=35 // pred_check_branch
        %605 = sbr.rel (%p603) target = $region44
      $region43: #{double_conv.3} parent=35 // pred_region
        _
      $region44: #{double_conv.3} parent=35 // pred_fallthru
        _
      // Predicated region
      $region45: #{double_conv.3} parent=35 // pred_check
        %p606 = pneg %p177
      $region46: #{double_conv.3} parent=35 // pred_check_branch
        %608 = sbr.rel (%p606) target = $region48
      $region47: #{double_conv.3} parent=35 // pred_region
        _
      $region48: #{double_conv.3} parent=35 // pred_fallthru
        _
    $region36: #{double_conv.3} parent=5 // pred_fallthru
      _
    %p609 = scmp.le.s32.totalorder 2, %s13
    // Predicated region
    $region49: #{double_conv.3} parent=5 // pred_check
      %p610 = pneg %p609
    $region50: #{double_conv.3} parent=5 // pred_check_branch
      %612 = sbr.rel (%p610) target = $region52
    $region51: #{double_conv.3} parent=5 // pred_region
      %s613 = ssub.s32 %s13, 2
      // Predicated region
      $region53: #{double_conv.3} parent=51 // pred_check
        %p614 = pneg %p131
      $region54: #{double_conv.3} parent=51 // pred_check_branch
        %616 = sbr.rel (%p614) target = $region56
      $region55: #{double_conv.3} parent=51 // pred_region
        %p617 = scmp.lt.s32.totalorder %s19, 1
        %s618 = scalar_select %p617, %s19, 1
        %s619 = smul.addr %s618, 6
        %s620 = smul.addr %s619, 4
        %s621 = scalar_lea.vmem %s4, %s620
      $region56: #{double_conv.3} parent=51 // pred_fallthru
        _
      // Predicated region
      $region57: #{double_conv.3} parent=51 // pred_check
        %p622 = pneg %p157
      $region58: #{double_conv.3} parent=51 // pred_check_branch
        %624 = sbr.rel (%p622) target = $region60
      $region59: #{double_conv.3} parent=51 // pred_region
        %p625 = scmp.lt.s32.totalorder %s19, 1
        %s626 = scalar_select %p625, %s19, 1
        %s627 = smul.addr %s626, 2
        %s628 = smul.addr %s627, 8
        %s629 = scalar_lea.vmem %s5, %s628
      $region60: #{double_conv.3} parent=51 // pred_fallthru
        _
      // Predicated region
      $region61: #{double_conv.3} parent=51 // pred_check
        %p630 = pneg %p183
      $region62: #{double_conv.3} parent=51 // pred_check_branch
        %632 = sbr.rel (%p630) target = $region64
      $region63: #{double_conv.3} parent=51 // pred_region
        %p633 = scmp.lt.s32.totalorder %s19, 1
        %s634 = scalar_select %p633, %s19, 1
        %s635 = smul.addr %s634, 2
        %s636 = smul.addr %s635, 8
        %s637 = scalar_lea.vmem %s6, %s636
      $region64: #{double_conv.3} parent=51 // pred_fallthru
        _
    $region52: #{double_conv.3} parent=5 // pred_fallthru
      _
  $region6: #{double_conv.3} parent=0 // loop_footer
    %s17 = sadd.s32 1, %s13
  $region7: #{double_conv.3} parent=0 // loop_footer_branch
    %12 = sbr.rel target = $region3
  $region8: #{double_conv.3} parent=0 // loop_exit
    _

// kernel: double_conv.4
$region0: #{double_conv.4}
  #allocation0 [shape = 'u32[]', space=smem, size = 0x4, offset = 0x4, fixed_abs, tag = 'smem constant byte address 0x4 - core index']
  #allocation1 [shape = 'u32[144,128]{1,0:T(1,128)}', space=vmem, size = 0x12000, scoped, tag = 'internal scratch']
  %s0 = inlined_call_operand.vmem [shape: bf16[2,16,342], index: 0, kind: input, shape index: {}]
  %s1 = inlined_call_operand.vmem [shape: f32[16,1], index: 1, kind: input, shape index: {}]
  %s2 = inlined_call_operand.vmem [shape: f32[16,1], index: 2, kind: input, shape index: {}]
  %s3 = inlined_call_operand.vmem [shape: bf16[16,144], index: 3, kind: input, shape index: {}]
  %s4 = inlined_call_operand.vmem [shape: f32[16,1], index: 4, kind: input, shape index: {}]
  %s5 = inlined_call_operand.vmem [shape: f32[1,342], index: 5, kind: input, shape index: {}]
  %s6 = inlined_call_operand.vmem [shape: f32[1,288], index: 6, kind: input, shape index: {}]
  %s7 = inlined_call_operand.vmem [shape: bf16[2,16,288], index: 7, kind: output, shape index: {0}]
  %s8 = inlined_call_operand.vmem [shape: f32[2,16,1], index: 8, kind: output, shape index: {1}]
  %s9 = inlined_call_operand.vmem [shape: f32[2,16,1], index: 9, kind: output, shape index: {2}]
  %10 = xla_tuple %s7, %s8, %s9
  %s11 = sld [smem:[#allocation0]]
  $region77: #{double_conv.4} parent=0
    _
  %s13 = ssub.s32 1, %s11
  %s14 = scalar_select 0, %s13, %s11
  loop: start=0, step=1, limit=4
  $region2: #{double_conv.4} parent=0 // loop_pre_header
    _
  $region3: #{double_conv.4} parent=0 // loop_header
    %s16 = sphi 0, %s20
    %p17 = scmp.ge.s32.totalorder %s16, 4
    %s26 = sphi 0, %s28
    %s29 = sphi 0, %s26
    %s30 = sphi 0, %s29
    %s46 = sphi 0, %s30
    %s50 = sphi 0, %s50
    %s52 = sphi 0, %s50
    %s53 = sphi 0, %s52
    %s67 = sphi 0, %s53
    %s71 = sphi 0, %s71
    %s73 = sphi 0, %s71
    %s74 = sphi 0, %s73
    %s88 = sphi 0, %s74
    %s92 = sphi 0, %s92
    %s94 = sphi 0, %s92
    %s95 = sphi 0, %s94
    %s109 = sphi 0, %s95
    %s113 = sphi 0, %s113
    %s115 = sphi 0, %s113
    %s116 = sphi 0, %s115
    %s130 = sphi 0, %s116
    %s134 = sphi 0, %s134
    %s136 = sphi 0, %s134
    %s137 = sphi 0, %s136
    %s151 = sphi 0, %s137
    %s155 = sphi 0, %s155
    %s157 = sphi 0, %s155
    %s158 = sphi 0, %s157
    %s172 = sphi 0, %s158
    %s178 = sphi 0, %s180
    %s181 = sphi 0, %s178
    %s182 = sphi 0, %s181
    %s198 = sphi 0, %s182
    %s204 = sphi 0, %s206
    %s207 = sphi 0, %s204
    %s208 = sphi 0, %s207
    %s224 = sphi 0, %s208
    %s230 = sphi 0, %s232
    %s233 = sphi 0, %s230
    %s234 = sphi 0, %s233
    %s250 = sphi 0, %s234
  $region4: #{double_conv.4} parent=0 // loop_header_branch
    %19 = sbr.rel (%p17) target = $region8
  $region5: #{double_conv.4} parent=0 // loop_body
    %s21 = ssub.s32 %s16, 1
    %s22 = ssub.s32 %s16, 2
    %s23 = sadd.s32 %s16, 1
    %s24 = ssub.s32 %s16, %s23
    %p25 = scmp.eq.s32.totalorder %s24, 0
    %s27 = sadd.s32 %s26, 1
    %s28 = scalar_select %p25, %s26, %s27
    %p31 = pneg %p25
    %p32 = scmp.eq.s32.totalorder %s16, 1
    %p33 = por %p31, %p32
    %p34 = scmp.ne.s32.totalorder %s26, %s29
    %p35 = scmp.eq.s32.totalorder %s16, 0
    %p36 = por %p34, %p35
    %p37 = scmp.ne.s32.totalorder %s26, %s29
    %p38 = scmp.eq.s32.totalorder %s21, 1
    %p39 = por %p37, %p38
    %p40 = scmp.ne.s32.totalorder %s29, %s30
    %p41 = scmp.eq.s32.totalorder %s21, 0
    %p42 = por %p40, %p41
    %p43 = scmp.ne.s32.totalorder %s29, %s30
    %p44 = scmp.eq.s32.totalorder %s22, 1
    %p45 = por %p43, %p44
    %p47 = scmp.ne.s32.totalorder %s30, %s46
    %p48 = scmp.eq.s32.totalorder %s22, 0
    %p49 = por %p47, %p48
    %s51 = sadd.s32 %s50, 1
    %p54 = scmp.eq.s32.totalorder %s16, 1
    %p55 = scmp.ne.s32.totalorder %s50, %s52
    %p56 = scmp.eq.s32.totalorder %s16, 0
    %p57 = por %p55, %p56
    %p58 = scmp.ne.s32.totalorder %s50, %s52
    %p59 = scmp.eq.s32.totalorder %s21, 1
    %p60 = por %p58, %p59
    %p61 = scmp.ne.s32.totalorder %s52, %s53
    %p62 = scmp.eq.s32.totalorder %s21, 0
    %p63 = por %p61, %p62
    %p64 = scmp.ne.s32.totalorder %s52, %s53
    %p65 = scmp.eq.s32.totalorder %s22, 1
    %p66 = por %p64, %p65
    %p68 = scmp.ne.s32.totalorder %s53, %s67
    %p69 = scmp.eq.s32.totalorder %s22, 0
    %p70 = por %p68, %p69
    %s72 = sadd.s32 %s71, 1
    %p75 = scmp.eq.s32.totalorder %s16, 1
    %p76 = scmp.ne.s32.totalorder %s71, %s73
    %p77 = scmp.eq.s32.totalorder %s16, 0
    %p78 = por %p76, %p77
    %p79 = scmp.ne.s32.totalorder %s71, %s73
    %p80 = scmp.eq.s32.totalorder %s21, 1
    %p81 = por %p79, %p80
    %p82 = scmp.ne.s32.totalorder %s73, %s74
    %p83 = scmp.eq.s32.totalorder %s21, 0
    %p84 = por %p82, %p83
    %p85 = scmp.ne.s32.totalorder %s73, %s74
    %p86 = scmp.eq.s32.totalorder %s22, 1
    %p87 = por %p85, %p86
    %p89 = scmp.ne.s32.totalorder %s74, %s88
    %p90 = scmp.eq.s32.totalorder %s22, 0
    %p91 = por %p89, %p90
    %s93 = sadd.s32 %s92, 1
    %p96 = scmp.eq.s32.totalorder %s16, 1
    %p97 = scmp.ne.s32.totalorder %s92, %s94
    %p98 = scmp.eq.s32.totalorder %s16, 0
    %p99 = por %p97, %p98
    %p100 = scmp.ne.s32.totalorder %s92, %s94
    %p101 = scmp.eq.s32.totalorder %s21, 1
    %p102 = por %p100, %p101
    %p103 = scmp.ne.s32.totalorder %s94, %s95
    %p104 = scmp.eq.s32.totalorder %s21, 0
    %p105 = por %p103, %p104
    %p106 = scmp.ne.s32.totalorder %s94, %s95
    %p107 = scmp.eq.s32.totalorder %s22, 1
    %p108 = por %p106, %p107
    %p110 = scmp.ne.s32.totalorder %s95, %s109
    %p111 = scmp.eq.s32.totalorder %s22, 0
    %p112 = por %p110, %p111
    %s114 = sadd.s32 %s113, 1
    %p117 = scmp.eq.s32.totalorder %s16, 1
    %p118 = scmp.ne.s32.totalorder %s113, %s115
    %p119 = scmp.eq.s32.totalorder %s16, 0
    %p120 = por %p118, %p119
    %p121 = scmp.ne.s32.totalorder %s113, %s115
    %p122 = scmp.eq.s32.totalorder %s21, 1
    %p123 = por %p121, %p122
    %p124 = scmp.ne.s32.totalorder %s115, %s116
    %p125 = scmp.eq.s32.totalorder %s21, 0
    %p126 = por %p124, %p125
    %p127 = scmp.ne.s32.totalorder %s115, %s116
    %p128 = scmp.eq.s32.totalorder %s22, 1
    %p129 = por %p127, %p128
    %p131 = scmp.ne.s32.totalorder %s116, %s130
    %p132 = scmp.eq.s32.totalorder %s22, 0
    %p133 = por %p131, %p132
    %s135 = sadd.s32 %s134, 1
    %p138 = scmp.eq.s32.totalorder %s16, 1
    %p139 = scmp.ne.s32.totalorder %s134, %s136
    %p140 = scmp.eq.s32.totalorder %s16, 0
    %p141 = por %p139, %p140
    %p142 = scmp.ne.s32.totalorder %s134, %s136
    %p143 = scmp.eq.s32.totalorder %s21, 1
    %p144 = por %p142, %p143
    %p145 = scmp.ne.s32.totalorder %s136, %s137
    %p146 = scmp.eq.s32.totalorder %s21, 0
    %p147 = por %p145, %p146
    %p148 = scmp.ne.s32.totalorder %s136, %s137
    %p149 = scmp.eq.s32.totalorder %s22, 1
    %p150 = por %p148, %p149
    %p152 = scmp.ne.s32.totalorder %s137, %s151
    %p153 = scmp.eq.s32.totalorder %s22, 0
    %p154 = por %p152, %p153
    %s156 = sadd.s32 %s155, 1
    %p159 = scmp.eq.s32.totalorder %s16, 1
    %p160 = scmp.ne.s32.totalorder %s155, %s157
    %p161 = scmp.eq.s32.totalorder %s16, 0
    %p162 = por %p160, %p161
    %p163 = scmp.ne.s32.totalorder %s155, %s157
    %p164 = scmp.eq.s32.totalorder %s21, 1
    %p165 = por %p163, %p164
    %p166 = scmp.ne.s32.totalorder %s157, %s158
    %p167 = scmp.eq.s32.totalorder %s21, 0
    %p168 = por %p166, %p167
    %p169 = scmp.ne.s32.totalorder %s157, %s158
    %p170 = scmp.eq.s32.totalorder %s22, 1
    %p171 = por %p169, %p170
    %p173 = scmp.ne.s32.totalorder %s158, %s172
    %p174 = scmp.eq.s32.totalorder %s22, 0
    %p175 = por %p173, %p174
    %s176 = ssub.s32 %s16, %s23
    %p177 = scmp.eq.s32.totalorder %s176, 0
    %s179 = sadd.s32 %s178, 1
    %s180 = scalar_select %p177, %s178, %s179
    %p183 = pneg %p177
    %p184 = scmp.eq.s32.totalorder %s16, 1
    %p185 = por %p183, %p184
    %p186 = scmp.ne.s32.totalorder %s178, %s181
    %p187 = scmp.eq.s32.totalorder %s16, 0
    %p188 = por %p186, %p187
    %p189 = scmp.ne.s32.totalorder %s178, %s181
    %p190 = scmp.eq.s32.totalorder %s21, 1
    %p191 = por %p189, %p190
    %p192 = scmp.ne.s32.totalorder %s181, %s182
    %p193 = scmp.eq.s32.totalorder %s21, 0
    %p194 = por %p192, %p193
    %p195 = scmp.ne.s32.totalorder %s181, %s182
    %p196 = scmp.eq.s32.totalorder %s22, 1
    %p197 = por %p195, %p196
    %p199 = scmp.ne.s32.totalorder %s182, %s198
    %p200 = scmp.eq.s32.totalorder %s22, 0
    %p201 = por %p199, %p200
    %s202 = ssub.s32 %s16, %s23
    %p203 = scmp.eq.s32.totalorder %s202, 0
    %s205 = sadd.s32 %s204, 1
    %s206 = scalar_select %p203, %s204, %s205
    %p209 = pneg %p203
    %p210 = scmp.eq.s32.totalorder %s16, 1
    %p211 = por %p209, %p210
    %p212 = scmp.ne.s32.totalorder %s204, %s207
    %p213 = scmp.eq.s32.totalorder %s16, 0
    %p214 = por %p212, %p213
    %p215 = scmp.ne.s32.totalorder %s204, %s207
    %p216 = scmp.eq.s32.totalorder %s21, 1
    %p217 = por %p215, %p216
    %p218 = scmp.ne.s32.totalorder %s207, %s208
    %p219 = scmp.eq.s32.totalorder %s21, 0
    %p220 = por %p218, %p219
    %p221 = scmp.ne.s32.totalorder %s207, %s208
    %p222 = scmp.eq.s32.totalorder %s22, 1
    %p223 = por %p221, %p222
    %p225 = scmp.ne.s32.totalorder %s208, %s224
    %p226 = scmp.eq.s32.totalorder %s22, 0
    %p227 = por %p225, %p226
    %s228 = ssub.s32 %s16, %s23
    %p229 = scmp.eq.s32.totalorder %s228, 0
    %s231 = sadd.s32 %s230, 1
    %s232 = scalar_select %p229, %s230, %s231
    %p235 = pneg %p229
    %p236 = scmp.eq.s32.totalorder %s16, 1
    %p237 = por %p235, %p236
    %p238 = scmp.ne.s32.totalorder %s230, %s233
    %p239 = scmp.eq.s32.totalorder %s16, 0
    %p240 = por %p238, %p239
    %p241 = scmp.ne.s32.totalorder %s230, %s233
    %p242 = scmp.eq.s32.totalorder %s21, 1
    %p243 = por %p241, %p242
    %p244 = scmp.ne.s32.totalorder %s233, %s234
    %p245 = scmp.eq.s32.totalorder %s21, 0
    %p246 = por %p244, %p245
    %p247 = scmp.ne.s32.totalorder %s233, %s234
    %p248 = scmp.eq.s32.totalorder %s22, 1
    %p249 = por %p247, %p248
    %p251 = scmp.ne.s32.totalorder %s234, %s250
    %p252 = scmp.eq.s32.totalorder %s22, 0
    %p253 = por %p251, %p252
    %p254 = scmp.le.s32.totalorder 1, %s16
    %p255 = scmp.lt.s32.totalorder %s16, 3
    %p256 = pnand %p254, %p255
    %p257 = pneg %p256
    // Predicated region
    $region9: #{double_conv.4} parent=5 // pred_check
      _
    $region10: #{double_conv.4} parent=5 // pred_check_branch
      %259 = sbr.rel (%p256) target = $region12
    $region11: #{double_conv.4} parent=5 // pred_region
      %s260 = ssub.s32 %s16, 1
      // Predicated region
      $region13: #{double_conv.4} parent=11 // pred_check
        %p261 = pneg %p63
      $region14: #{double_conv.4} parent=11 // pred_check_branch
        %263 = sbr.rel (%p261) target = $region16
      $region15: #{double_conv.4} parent=11 // pred_region
        _
      $region16: #{double_conv.4} parent=11 // pred_fallthru
        _
      // Predicated region
      $region17: #{double_conv.4} parent=11 // pred_check
        %p264 = pneg %p84
      $region18: #{double_conv.4} parent=11 // pred_check_branch
        %266 = sbr.rel (%p264) target = $region20
      $region19: #{double_conv.4} parent=11 // pred_region
        _
      $region20: #{double_conv.4} parent=11 // pred_fallthru
        _
      // Predicated region
      $region21: #{double_conv.4} parent=11 // pred_check
        %p267 = pneg %p105
      $region22: #{double_conv.4} parent=11 // pred_check_branch
        %269 = sbr.rel (%p267) target = $region24
      $region23: #{double_conv.4} parent=11 // pred_region
        _
      $region24: #{double_conv.4} parent=11 // pred_fallthru
        _
      // Predicated region
      $region25: #{double_conv.4} parent=11 // pred_check
        %p270 = pneg %p126
      $region26: #{double_conv.4} parent=11 // pred_check_branch
        %272 = sbr.rel (%p270) target = $region28
      $region27: #{double_conv.4} parent=11 // pred_region
        _
      $region28: #{double_conv.4} parent=11 // pred_fallthru
        _
      // Predicated region
      $region29: #{double_conv.4} parent=11 // pred_check
        %p273 = pneg %p147
      $region30: #{double_conv.4} parent=11 // pred_check_branch
        %275 = sbr.rel (%p273) target = $region32
      $region31: #{double_conv.4} parent=11 // pred_region
        _
      $region32: #{double_conv.4} parent=11 // pred_fallthru
        _
      // Predicated region
      $region33: #{double_conv.4} parent=11 // pred_check
        %p276 = pneg %p168
      $region34: #{double_conv.4} parent=11 // pred_check_branch
        %278 = sbr.rel (%p276) target = $region36
      $region35: #{double_conv.4} parent=11 // pred_region
        _
      $region36: #{double_conv.4} parent=11 // pred_fallthru
        _
    $region12: #{double_conv.4} parent=5 // pred_fallthru
      _
    %p279 = scmp.lt.s32.totalorder %s16, 2
    // Predicated region
    $region37: #{double_conv.4} parent=5 // pred_check
      %p280 = pneg %p279
    $region38: #{double_conv.4} parent=5 // pred_check_branch
      %282 = sbr.rel (%p280) target = $region40
    $region39: #{double_conv.4} parent=5 // pred_region
      // Predicated region
      $region41: #{double_conv.4} parent=39 // pred_check
        %p283 = pneg %p36
      $region42: #{double_conv.4} parent=39 // pred_check_branch
        %285 = sbr.rel (%p283) target = $region44
      $region43: #{double_conv.4} parent=39 // pred_region
        %p286 = scmp.lt.s32.totalorder %s16, 1
        %s287 = scalar_select %p286, %s16, 1
        %s288 = smul.addr %s287, 6
        %s289 = smul.addr %s288, 4
        %s290 = scalar_lea.vmem %s0, %s289
      $region44: #{double_conv.4} parent=39 // pred_fallthru
        _
    $region40: #{double_conv.4} parent=5 // pred_fallthru
      _
    %p291 = scmp.le.s32.totalorder 1, %s16
    %p292 = scmp.lt.s32.totalorder %s16, 3
    %p293 = pnand %p291, %p292
    %p294 = pneg %p293
    // Predicated region
    $region45: #{double_conv.4} parent=5 // pred_check
      _
    $region46: #{double_conv.4} parent=5 // pred_check_branch
      %296 = sbr.rel (%p293) target = $region48
    $region47: #{double_conv.4} parent=5 // pred_region
      %s297 = ssub.s32 %s16, 1
      %p298 = scmp.lt.s32.totalorder %s21, 1
      %s299 = scalar_select %p298, %s21, 1
      %s300 = smul.addr %s299, 6
      %s301 = smul.addr %s300, 4
      %s302 = scalar_lea.vmem %s0, %s301
      %p303 = pneg %p42
      %p304 = pneg %p39
      %p305 = pneg %p63
      %p306 = pneg %p60
      %p307 = pneg %p84
      %p308 = pneg %p81
      %p309 = pneg %p105
      %p310 = pneg %p102
      %p311 = pneg %p126
      %p312 = pneg %p123
      %p313 = pneg %p147
      %p314 = pneg %p144
      %p315 = pneg %p168
      %p316 = pneg %p165
      %p317 = pneg %p194
      %p318 = pneg %p191
      %p319 = scmp.lt.s32.totalorder %s21, 1
      %s320 = scalar_select %p319, %s21, 1
      %s321 = smul.addr %s320, 6
      %s322 = smul.addr %s321, 4
      %s323 = scalar_lea.vmem %s7, %s322
      %p324 = pneg %p220
      %p325 = pneg %p217
      %p326 = scmp.lt.s32.totalorder %s21, 1
      %s327 = scalar_select %p326, %s21, 1
      %s328 = smul.addr %s327, 2
      %s329 = smul.addr %s328, 8
      %s330 = scalar_lea.vmem %s8, %s329
      %p331 = pneg %p246
      %p332 = pneg %p243
      %p333 = scmp.lt.s32.totalorder %s21, 1
      %s334 = scalar_select %p333, %s21, 1
      %s335 = smul.addr %s334, 2
      %s336 = smul.addr %s335, 8
      %s337 = scalar_lea.vmem %s9, %s336
      %p338 = scmp.lt.s32.totalorder %s21, 1
      %s339 = scalar_select %p338, %s21, 1
      %s340 = smul.addr %s339, 6
      %s341 = smul.addr %s340, 4
      %s342 = scalar_lea.vmem %s0, %s341
      %p343 = scmp.lt.s32.totalorder %s21, 1
      %s344 = scalar_select %p343, %s21, 1
      %s345 = smul.addr %s344, 6
      %s346 = smul.addr %s345, 4
      %s347 = scalar_lea.vmem %s7, %s346
      %p348 = scmp.lt.s32.totalorder %s21, 1
      %s349 = scalar_select %p348, %s21, 1
      %s350 = smul.addr %s349, 2
      %s351 = smul.addr %s350, 8
      %s352 = scalar_lea.vmem %s8, %s351
      %p353 = scmp.lt.s32.totalorder %s21, 1
      %s354 = scalar_select %p353, %s21, 1
      %s355 = smul.addr %s354, 2
      %s356 = smul.addr %s355, 8
      %s357 = scalar_lea.vmem %s9, %s356
      %v359 = vld [vmem:[%s342] sm:$0xff]
      %v360 = vld [vmem:[%s342 + $0x8] sm:$0xf]
      %v361 = vld [vmem:[%s342 + $0xc] sm:$0xff]
      %v362 = vld [vmem:[%s342 + $0x14] sm:$0xf]
      %v363 = vunpack.c.l.bf16 %v359
      %v364 = vunpack.c.h.bf16 %v359
      %v365 = vunpack.c.l.bf16 %v360
      %v366 = vunpack.c.l.bf16 %v361
      %v367 = vunpack.c.h.bf16 %v361
      %v368 = vunpack.c.l.bf16 %v362
      %v369 = vld [vmem:[%s1] sm:$0xff]
      %v370 = vld [vmem:[%s1 + $0x8] sm:$0xff]
      %372 = vset.pattern.permute.xlu0 0
      %373 = vperm.xlu0 %372, %v369
      %v374 = vpop.permute.xlu0 %373
      %377 = vset.pattern.permute.xlu0 0
      %378 = vperm.xlu0 %377, %v370
      %v379 = vpop.permute.xlu0 %378
      %v381 = vmul.f32 %v363, %v374
      %v382 = vmul.f32 %v364, %v374
      %v383 = vmul.f32 %v365, %v374
      %v384 = vmul.f32 %v366, %v379
      %v385 = vmul.f32 %v367, %v379
      %v386 = vmul.f32 %v368, %v379
      %v387 = vld [vmem:[%s2] sm:$0xff]
      %v388 = vld [vmem:[%s2 + $0x8] sm:$0xff]
      %390 = vset.pattern.permute.xlu0 0
      %391 = vperm.xlu0 %390, %v387
      %v392 = vpop.permute.xlu0 %391
      %395 = vset.pattern.permute.xlu0 0
      %396 = vperm.xlu0 %395, %v388
      %v397 = vpop.permute.xlu0 %396
      %v399 = vadd.f32 %v381, %v392
      %v400 = vadd.f32 %v382, %v392
      %v401 = vadd.f32 %v383, %v392
      %v402 = vadd.f32 %v384, %v397
      %v403 = vadd.f32 %v385, %v397
      %v404 = vadd.f32 %v386, %v397
      %v405 = vmax.f32 %v399, 0.0
      %v406 = vmax.f32 %v400, 0.0
      %v407 = vmax.f32 %v401, 0.0
      %v408 = vmax.f32 %v402, 0.0
      %v409 = vmax.f32 %v403, 0.0
      %v410 = vmax.f32 %v404, 0.0
      %v411 = vld [vmem:[%s5] sm:$0x7]
      %v413 = vlaneseq
      %v414 = vshrl.u32 %v413, 7
      %v415 = vsub.s32 0, %v414
      %v416 = vrot.slane %v411, %v415
      %v417 = vlaneseq
      %v418 = vshrl.u32 %v417, 7
      %v419 = vsub.s32 1, %v418
      %v420 = vrot.slane %v411, %v419
      %v421 = vlaneseq
      %v422 = vshrl.u32 %v421, 7
      %v423 = vsub.s32 2, %v422
      %v424 = vrot.slane %v411, %v423
      %v428 = vmul.f32 %v405, %v416
      %v429 = vmul.f32 %v406, %v420
      %v430 = vmul.f32 %v407, %v424
      %v431 = vmul.f32 %v408, %v416
      %v432 = vmul.f32 %v409, %v420
      %v433 = vmul.f32 %v410, %v424
      %v434 = vld [vmem:[%s3] sm:$0xff]
      %v435 = vld [vmem:[%s3 + $0x8] sm:$0xff]
      %v436 = vld [vmem:[%s4] sm:$0xff]
      %v437 = vld [vmem:[%s4 + $0x8] sm:$0xff]
      %v438 = vpack.c.bf16 %v431, %v428
      %v439 = vpack.c.bf16 %v432, %v429
      %v440 = vpack.c.bf16 %v433, %v430
      %444 = vrot.lane.b32.xlu0 %v438, 127
      %v445 = vpop.permute.xlu0 %444
      %446 = vrot.lane.b32.xlu0 %v439, 127
      %v447 = vpop.permute.xlu0 %446
      %448 = vrot.lane.b32.xlu0 %v440, 127
      %v449 = vpop.permute.xlu0 %448
      %vm450 = vcmask 1039360
      %v451 = vsel %vm450, %v445, %v447
      %v452 = vsel %vm450, %v447, %v449
      %456 = vrot.lane.b32.xlu0 %v438, 126
      %v457 = vpop.permute.xlu0 %456
      %458 = vrot.lane.b32.xlu0 %v439, 126
      %v459 = vpop.permute.xlu0 %458
      %460 = vrot.lane.b32.xlu0 %v440, 126
      %v461 = vpop.permute.xlu0 %460
      %vm462 = vcmask 1031168
      %v463 = vsel %vm462, %v457, %v459
      %v464 = vsel %vm462, %v459, %v461
      %468 = vrot.lane.b32.xlu0 %v438, 110
      %v469 = vpop.permute.xlu0 %468
      %470 = vrot.lane.b32.xlu0 %v439, 110
      %v471 = vpop.permute.xlu0 %470
      %472 = vrot.lane.b32.xlu0 %v440, 110
      %v473 = vpop.permute.xlu0 %472
      %vm474 = vcmask 900096
      %v475 = vsel %vm474, %v469, %v471
      %v476 = vsel %vm474, %v471, %v473
      %480 = vrot.lane.b32.xlu0 %v438, 109
      %v481 = vpop.permute.xlu0 %480
      %482 = vrot.lane.b32.xlu0 %v439, 109
      %v483 = vpop.permute.xlu0 %482
      %484 = vrot.lane.b32.xlu0 %v440, 109
      %v485 = vpop.permute.xlu0 %484
      %vm486 = vcmask 891904
      %v487 = vsel %vm486, %v481, %v483
      %v488 = vsel %vm486, %v483, %v485
      %492 = vrot.lane.b32.xlu0 %v438, 108
      %v493 = vpop.permute.xlu0 %492
      %494 = vrot.lane.b32.xlu0 %v439, 108
      %v495 = vpop.permute.xlu0 %494
      %496 = vrot.lane.b32.xlu0 %v440, 108
      %v497 = vpop.permute.xlu0 %496
      %vm498 = vcmask 883712
      %v499 = vsel %vm498, %v493, %v495
      %v500 = vsel %vm498, %v495, %v497
      %504 = vrot.lane.b32.xlu0 %v438, 92
      %v505 = vpop.permute.xlu0 %504
      %506 = vrot.lane.b32.xlu0 %v439, 92
      %v507 = vpop.permute.xlu0 %506
      %508 = vrot.lane.b32.xlu0 %v440, 92
      %v509 = vpop.permute.xlu0 %508
      %vm510 = vcmask 752640
      %v511 = vsel %vm510, %v505, %v507
      %v512 = vsel %vm510, %v507, %v509
      %516 = vrot.lane.b32.xlu0 %v438, 91
      %v517 = vpop.permute.xlu0 %516
      %518 = vrot.lane.b32.xlu0 %v439, 91
      %v519 = vpop.permute.xlu0 %518
      %520 = vrot.lane.b32.xlu0 %v440, 91
      %v521 = vpop.permute.xlu0 %520
      %vm522 = vcmask 744448
      %v523 = vsel %vm522, %v517, %v519
      %v524 = vsel %vm522, %v519, %v521
      %528 = vrot.lane.b32.xlu0 %v438, 90
      %v529 = vpop.permute.xlu0 %528
      %530 = vrot.lane.b32.xlu0 %v439, 90
      %v531 = vpop.permute.xlu0 %530
      %532 = vrot.lane.b32.xlu0 %v440, 90
      %v533 = vpop.permute.xlu0 %532
      %vm534 = vcmask 736256
      %v535 = vsel %vm534, %v529, %v531
      %v536 = vsel %vm534, %v531, %v533
      %541 = vset.pattern.permute.xlu0 0
      %542 = vperm.xlu0 %541, %v436
      %v543 = vpop.permute.xlu0 %542
      %546 = vset.pattern.permute.xlu0 0
      %547 = vperm.xlu0 %546, %v437
      %v548 = vpop.permute.xlu0 %547
      %v552 = vunpack.c.l.b16 %v434
      %v553 = vunpack.c.h.b16 %v434
      %v554 = vunpack.c.l.b16 %v435
      %v555 = vunpack.c.h.b16 %v435
      %v556 = vpack.c.b16 %v554, %v552
      %v557 = vpack.c.b16 %v555, %v553
      %vm559 = vcmask 130048
      %v561 = vsel %vm559, %v557, 0
      %563 = vmatprep.subr.bf16.mxu0 %v439
      %564 = vmatpush1.bf16.msra.mxu0 %v438
      %565 = vmatprep.subr.bf16.mxu0 %v452
      %566 = vmatpush1.bf16.msra.mxu0 %v451
      %567 = vmatprep.subr.bf16.mxu0 %v464
      %568 = vmatpush1.bf16.msra.mxu0 %v463
      %569 = vmatprep.subr.bf16.mxu0 %v476
      %570 = vmatpush1.bf16.msra.mxu0 %v475
      %571 = vmatprep.subr.bf16.mxu0 %v488
      %572 = vmatpush1.bf16.msra.mxu0 %v487
      %573 = vmatprep.subr.bf16.mxu0 %v500
      %574 = vmatpush1.bf16.msra.mxu0 %v499
      %575 = vmatprep.subr.bf16.mxu0 %v512
      %576 = vmatpush1.bf16.msra.mxu0 %v511
      %577 = vmatprep.subr.bf16.mxu0 %v524
      %578 = vmatpush1.bf16.msra.mxu0 %v523
      %579 = vmatprep.subr.bf16.mxu0 %v536
      %580 = vmatpush1.bf16.msra.mxu0 %v535
      %581 = vmatprep.subr.bf16.mxu0 0
      %582 = vmatpush1.bf16.msra.mxu0 0
      %583 = vmatprep.subr.bf16.mxu0 0
      %584 = vmatpush1.bf16.msra.mxu0 0
      %585 = vmatprep.subr.bf16.mxu0 0
      %586 = vmatpush1.bf16.msra.mxu0 0
      %587 = vmatprep.subr.bf16.mxu0 0
      %588 = vmatpush1.bf16.msra.mxu0 0
      %589 = vmatprep.subr.bf16.mxu0 0
      %590 = vmatpush1.bf16.msra.mxu0 0
      %591 = vmatprep.subr.bf16.mxu0 0
      %592 = vmatpush1.bf16.msra.mxu0 0
      %593 = vmatprep.subr.bf16.mxu0 0
      %594 = vmatpush1.bf16.msra.mxu0 0
      %595 = vmatprep.mubr.bf16.mxu0 %v561
      %596 = vmatmul.mubr.bf16.gmra.mrb[0].mxu0 %v556
      %v597 = vpop.f32.mrb[0].mxu0
      %v598 = vadd.f32 %v543, %v597
      %v599 = vpop.f32.mrb[0].mxu0
      %v600 = vadd.f32 %v543, %v599
      %v601 = vpop.f32.mrb[0].mxu0
      %v602 = vadd.f32 %v548, %v601
      %v603 = vpop.f32.mrb[0].mxu0
      %v604 = vadd.f32 %v548, %v603
      %605 = vdwg.mxu0
      %606 = vmatprep.subr.bf16.mxu0 0
      %607 = vmatpush1.bf16.msra.mxu0 %v440
      %608 = vmatprep.subr.bf16.mxu0 0
      %609 = vmatpush1.bf16.msra.mxu0 %v449
      %610 = vmatprep.subr.bf16.mxu0 0
      %611 = vmatpush1.bf16.msra.mxu0 %v461
      %612 = vmatprep.subr.bf16.mxu0 0
      %613 = vmatpush1.bf16.msra.mxu0 %v473
      %614 = vmatprep.subr.bf16.mxu0 0
      %615 = vmatpush1.bf16.msra.mxu0 %v485
      %616 = vmatprep.subr.bf16.mxu0 0
      %617 = vmatpush1.bf16.msra.mxu0 %v497
      %618 = vmatprep.subr.bf16.mxu0 0
      %619 = vmatpush1.bf16.msra.mxu0 %v509
      %620 = vmatprep.subr.bf16.mxu0 0
      %621 = vmatpush1.bf16.msra.mxu0 %v521
      %622 = vmatprep.subr.bf16.mxu0 0
      %623 = vmatpush1.bf16.msra.mxu0 %v533
      %624 = vmatprep.subr.bf16.mxu0 0
      %625 = vmatpush1.bf16.msra.mxu0 0
      %626 = vmatprep.subr.bf16.mxu0 0
      %627 = vmatpush1.bf16.msra.mxu0 0
      %628 = vmatprep.subr.bf16.mxu0 0
      %629 = vmatpush1.bf16.msra.mxu0 0
      %630 = vmatprep.subr.bf16.mxu0 0
      %631 = vmatpush1.bf16.msra.mxu0 0
      %632 = vmatprep.subr.bf16.mxu0 0
      %633 = vmatpush1.bf16.msra.mxu0 0
      %634 = vmatprep.subr.bf16.mxu0 0
      %635 = vmatpush1.bf16.msra.mxu0 0
      %636 = vmatprep.subr.bf16.mxu0 0
      %637 = vmatpush1.bf16.msra.mxu0 0
      %638 = vmatprep.mubr.bf16.mxu0 %v561
      %639 = vmatmul.mubr.bf16.gmra.mrb[0].mxu0 %v556
      %v640 = vpop.f32.mrb[0].mxu0
      %v641 = vadd.f32 %v543, %v640
      %v642 = vpop.f32.mrb[0].mxu0
      %v643 = vpop.f32.mrb[0].mxu0
      %v644 = vadd.f32 %v548, %v643
      %v645 = vpop.f32.mrb[0].mxu0
      %646 = vdwg.mxu0
      %v647 = vpack.c.bf16 %v602, %v598
      %v648 = vpack.c.bf16 %v604, %v600
      %v649 = vpack.c.bf16 %v644, %v641
      %v653 = vunpack.c.l.b16 %v647
      %v654 = vunpack.c.l.b16 %v648
      %v655 = vunpack.c.l.b16 %v649
      %v656 = vunpack.c.h.b16 %v647
      %v657 = vunpack.c.h.b16 %v648
      %v658 = vunpack.c.h.b16 %v649
      %v659 = vpack.c.b16 %v654, %v653
      %v660 = vpack.c.b16 %v655, %v655
      %v661 = vpack.c.b16 %v657, %v656
      %v662 = vpack.c.b16 %v658, %v658
      %667 = vst [vmem:[%s347] sm:$0xff] %v659
      %vm668 = vcmask 257024
      %669 = vst.msk [vmem:[%s347 + $0x8] sm:$0xf] %vm668, %v660
      %670 = vst [vmem:[%s347 + $0xc] sm:$0xff] %v661
      %671 = vst.msk [vmem:[%s347 + $0x14] sm:$0xf] %vm668, %v662
      %v672 = vld [vmem:[%s6] sm:$0x7]
      %v674 = vlaneseq
      %v675 = vshrl.u32 %v674, 7
      %v676 = vsub.s32 0, %v675
      %v677 = vrot.slane %v672, %v676
      %v678 = vlaneseq
      %v679 = vshrl.u32 %v678, 7
      %v680 = vsub.s32 1, %v679
      %v681 = vrot.slane %v672, %v680
      %v682 = vlaneseq
      %v683 = vshrl.u32 %v682, 7
      %v684 = vsub.s32 2, %v683
      %v685 = vrot.slane %v672, %v684
      %v689 = vmul.f32 %v598, %v677
      %v690 = vmul.f32 %v600, %v681
      %v691 = vmul.f32 %v641, %v685
      %v692 = vmul.f32 %v602, %v677
      %v693 = vmul.f32 %v604, %v681
      %v694 = vmul.f32 %v644, %v685
      %v695 = vadd.f32 %v689, %v690
      %vm696 = vcmask 261120
      %v697 = vsel %vm696, %v691, 0.0
      %v698 = vadd.f32 %v695, %v697
      %699 = vadd.xlane.f32.xlu0 %v698
      %v700 = vpop.xlane.xlu0 %699
      %v701 = vadd.f32 %v692, %v693
      %v702 = vsel %vm696, %v694, 0.0
      %v703 = vadd.f32 %v701, %v702
      %704 = vadd.xlane.f32.xlu0 %v703
      %v705 = vpop.xlane.xlu0 %704
      %vm706 = vcmask 7168
      %707 = vst.msk [vmem:[%s352] sm:$0xff] %vm706, %v700
      %708 = vst.msk [vmem:[%s352 + $0x8] sm:$0xff] %vm706, %v705
      %v709 = vmul.f32 %v689, %v598
      %v710 = vmul.f32 %v690, %v600
      %v711 = vmul.f32 %v691, %v641
      %v712 = vmul.f32 %v692, %v602
      %v713 = vmul.f32 %v693, %v604
      %v714 = vmul.f32 %v694, %v644
      %v715 = vadd.f32 %v709, %v710
      %v716 = vsel %vm696, %v711, 0.0
      %v717 = vadd.f32 %v715, %v716
      %718 = vadd.xlane.f32.xlu0 %v717
      %v719 = vpop.xlane.xlu0 %718
      %v720 = vadd.f32 %v712, %v713
      %v721 = vsel %vm696, %v714, 0.0
      %v722 = vadd.f32 %v720, %v721
      %723 = vadd.xlane.f32.xlu0 %v722
      %v724 = vpop.xlane.xlu0 %723
      %725 = vst.msk [vmem:[%s357] sm:$0xff] %vm706, %v719
      %726 = vst.msk [vmem:[%s357 + $0x8] sm:$0xff] %vm706, %v724
      %p727 = scmp.lt.s32.totalorder %s21, 1
      %s728 = scalar_select %p727, %s21, 1
      %s729 = smul.addr %s728, 6
      %s730 = smul.addr %s729, 4
      %s731 = scalar_lea.vmem %s7, %s730
      %p732 = scmp.lt.s32.totalorder %s21, 1
      %s733 = scalar_select %p732, %s21, 1
      %s734 = smul.addr %s733, 2
      %s735 = smul.addr %s734, 8
      %s736 = scalar_lea.vmem %s8, %s735
      %p737 = scmp.lt.s32.totalorder %s21, 1
      %s738 = scalar_select %p737, %s21, 1
      %s739 = smul.addr %s738, 2
      %s740 = smul.addr %s739, 8
      %s741 = scalar_lea.vmem %s9, %s740
      // Predicated region
      $region49: #{double_conv.4} parent=47 // pred_check
        %p742 = pneg %p191
      $region50: #{double_conv.4} parent=47 // pred_check_branch
        %744 = sbr.rel (%p742) target = $region52
      $region51: #{double_conv.4} parent=47 // pred_region
        _
      $region52: #{double_conv.4} parent=47 // pred_fallthru
        _
      // Predicated region
      $region53: #{double_conv.4} parent=47 // pred_check
        %p745 = pneg %p217
      $region54: #{double_conv.4} parent=47 // pred_check_branch
        %747 = sbr.rel (%p745) target = $region56
      $region55: #{double_conv.4} parent=47 // pred_region
        _
      $region56: #{double_conv.4} parent=47 // pred_fallthru
        _
      // Predicated region
      $region57: #{double_conv.4} parent=47 // pred_check
        %p748 = pneg %p243
      $region58: #{double_conv.4} parent=47 // pred_check_branch
        %750 = sbr.rel (%p748) target = $region60
      $region59: #{double_conv.4} parent=47 // pred_region
        _
      $region60: #{double_conv.4} parent=47 // pred_fallthru
        _
    $region48: #{double_conv.4} parent=5 // pred_fallthru
      _
    %p751 = scmp.le.s32.totalorder 2, %s16
    // Predicated region
    $region61: #{double_conv.4} parent=5 // pred_check
      %p752 = pneg %p751
    $region62: #{double_conv.4} parent=5 // pred_check_branch
      %754 = sbr.rel (%p752) target = $region64
    $region63: #{double_conv.4} parent=5 // pred_region
      %s755 = ssub.s32 %s16, 2
      // Predicated region
      $region65: #{double_conv.4} parent=63 // pred_check
        %p756 = pneg %p197
      $region66: #{double_conv.4} parent=63 // pred_check_branch
        %758 = sbr.rel (%p756) target = $region68
      $region67: #{double_conv.4} parent=63 // pred_region
        %p759 = scmp.lt.s32.totalorder %s22, 1
        %s760 = scalar_select %p759, %s22, 1
        %s761 = smul.addr %s760, 6
        %s762 = smul.addr %s761, 4
        %s763 = scalar_lea.vmem %s7, %s762
      $region68: #{double_conv.4} parent=63 // pred_fallthru
        _
      // Predicated region
      $region69: #{double_conv.4} parent=63 // pred_check
        %p764 = pneg %p223
      $region70: #{double_conv.4} parent=63 // pred_check_branch
        %766 = sbr.rel (%p764) target = $region72
      $region71: #{double_conv.4} parent=63 // pred_region
        %p767 = scmp.lt.s32.totalorder %s22, 1
        %s768 = scalar_select %p767, %s22, 1
        %s769 = smul.addr %s768, 2
        %s770 = smul.addr %s769, 8
        %s771 = scalar_lea.vmem %s8, %s770
      $region72: #{double_conv.4} parent=63 // pred_fallthru
        _
      // Predicated region
      $region73: #{double_conv.4} parent=63 // pred_check
        %p772 = pneg %p249
      $region74: #{double_conv.4} parent=63 // pred_check_branch
        %774 = sbr.rel (%p772) target = $region76
      $region75: #{double_conv.4} parent=63 // pred_region
        %p775 = scmp.lt.s32.totalorder %s22, 1
        %s776 = scalar_select %p775, %s22, 1
        %s777 = smul.addr %s776, 2
        %s778 = smul.addr %s777, 8
        %s779 = scalar_lea.vmem %s9, %s778
      $region76: #{double_conv.4} parent=63 // pred_fallthru
        _
    $region64: #{double_conv.4} parent=5 // pred_fallthru
      _
  $region6: #{double_conv.4} parent=0 // loop_footer
    %s20 = sadd.s32 1, %s16
  $region7: #{double_conv.4} parent=0 // loop_footer_branch
    %15 = sbr.rel target = $region3
  $region8: #{double_conv.4} parent=0 // loop_exit
    _

// kernel: double_conv.5
$region0: #{double_conv.5}
  #allocation0 [shape = 'u32[]', space=smem, size = 0x4, offset = 0x4, fixed_abs, tag = 'smem constant byte address 0x4 - core index']
  #allocation1 [shape = 'u32[144,128]{1,0:T(1,128)}', space=vmem, size = 0x12000, scoped, tag = 'internal scratch']
  %s0 = inlined_call_operand.vmem [shape: bf16[2,16,16,18], index: 0, kind: input, shape index: {}]
  %s1 = inlined_call_operand.vmem [shape: f32[16,1,1], index: 1, kind: input, shape index: {}]
  %s2 = inlined_call_operand.vmem [shape: f32[16,1,1], index: 2, kind: input, shape index: {}]
  %s3 = inlined_call_operand.hbm [shape: f32[2,16,16,16], index: 3, kind: output, shape index: {}]
  %s4 = sld [smem:[#allocation0]]
  $region45: #{double_conv.5} parent=0
    _
  %s6 = ssub.s32 1, %s4
  %s7 = scalar_select 0, %s6, %s4
  $region1: #{double_conv.5} parent=0
    #allocation2 [shape = 'u8[262144]{0}', space=vmem, size = 0x40000, scoped, tag = 'output window, operand 0']
    #allocation3 [shape = 's32[2]{0}', space=sflag, size = 0x8, scoped, tag = 'scoped memory for double_conv.5']
    %8 = vsyncpa [#allocation3], 0
    %s9 = scalar_lea.sflag [#allocation3], 1
    %10 = vsyncpa %s9, 0
    loop: start=0, step=1, limit=4
    $region2: #{double_conv.5} parent=1 // loop_pre_header
      _
    $region3: #{double_conv.5} parent=1 // loop_header
      %s12 = sphi 0, %s16
      %p13 = scmp.ge.s32.totalorder %s12, 4
      %s22 = sphi 0, %s24
      %s25 = sphi 0, %s22
      %s26 = sphi 0, %s25
      %s42 = sphi 0, %s26
      %s46 = sphi 0, %s46
      %s48 = sphi 0, %s46
      %s49 = sphi 0, %s48
      %s63 = sphi 0, %s49
      %s67 = sphi 0, %s67
      %s69 = sphi 0, %s67
      %s70 = sphi 0, %s69
      %s84 = sphi 0, %s70
      %s90 = sphi 0, %s92
      %s93 = sphi 0, %s90
      %s94 = sphi 0, %s93
      %s110 = sphi 0, %s94
    $region4: #{double_conv.5} parent=1 // loop_header_branch
      %15 = sbr.rel (%p13) target = $region8
    $region5: #{double_conv.5} parent=1 // loop_body
      %s17 = ssub.s32 %s12, 1
      %s18 = ssub.s32 %s12, 2
      %s19 = sadd.s32 %s12, 1
      %s20 = ssub.s32 %s12, %s19
      %p21 = scmp.eq.s32.totalorder %s20, 0
      %s23 = sadd.s32 %s22, 1
      %s24 = scalar_select %p21, %s22, %s23
      %p27 = pneg %p21
      %p28 = scmp.eq.s32.totalorder %s12, 1
      %p29 = por %p27, %p28
      %p30 = scmp.ne.s32.totalorder %s22, %s25
      %p31 = scmp.eq.s32.totalorder %s12, 0
      %p32 = por %p30, %p31
      %p33 = scmp.ne.s32.totalorder %s22, %s25
      %p34 = scmp.eq.s32.totalorder %s17, 1
      %p35 = por %p33, %p34
      %p36 = scmp.ne.s32.totalorder %s25, %s26
      %p37 = scmp.eq.s32.totalorder %s17, 0
      %p38 = por %p36, %p37
      %p39 = scmp.ne.s32.totalorder %s25, %s26
      %p40 = scmp.eq.s32.totalorder %s18, 1
      %p41 = por %p39, %p40
      %p43 = scmp.ne.s32.totalorder %s26, %s42
      %p44 = scmp.eq.s32.totalorder %s18, 0
      %p45 = por %p43, %p44
      %s47 = sadd.s32 %s46, 1
      %p50 = scmp.eq.s32.totalorder %s12, 1
      %p51 = scmp.ne.s32.totalorder %s46, %s48
      %p52 = scmp.eq.s32.totalorder %s12, 0
      %p53 = por %p51, %p52
      %p54 = scmp.ne.s32.totalorder %s46, %s48
      %p55 = scmp.eq.s32.totalorder %s17, 1
      %p56 = por %p54, %p55
      %p57 = scmp.ne.s32.totalorder %s48, %s49
      %p58 = scmp.eq.s32.totalorder %s17, 0
      %p59 = por %p57, %p58
      %p60 = scmp.ne.s32.totalorder %s48, %s49
      %p61 = scmp.eq.s32.totalorder %s18, 1
      %p62 = por %p60, %p61
      %p64 = scmp.ne.s32.totalorder %s49, %s63
      %p65 = scmp.eq.s32.totalorder %s18, 0
      %p66 = por %p64, %p65
      %s68 = sadd.s32 %s67, 1
      %p71 = scmp.eq.s32.totalorder %s12, 1
      %p72 = scmp.ne.s32.totalorder %s67, %s69
      %p73 = scmp.eq.s32.totalorder %s12, 0
      %p74 = por %p72, %p73
      %p75 = scmp.ne.s32.totalorder %s67, %s69
      %p76 = scmp.eq.s32.totalorder %s17, 1
      %p77 = por %p75, %p76
      %p78 = scmp.ne.s32.totalorder %s69, %s70
      %p79 = scmp.eq.s32.totalorder %s17, 0
      %p80 = por %p78, %p79
      %p81 = scmp.ne.s32.totalorder %s69, %s70
      %p82 = scmp.eq.s32.totalorder %s18, 1
      %p83 = por %p81, %p82
      %p85 = scmp.ne.s32.totalorder %s70, %s84
      %p86 = scmp.eq.s32.totalorder %s18, 0
      %p87 = por %p85, %p86
      %s88 = ssub.s32 %s12, %s19
      %p89 = scmp.eq.s32.totalorder %s88, 0
      %s91 = sadd.s32 %s90, 1
      %s92 = scalar_select %p89, %s90, %s91
      %p95 = pneg %p89
      %p96 = scmp.eq.s32.totalorder %s12, 1
      %p97 = por %p95, %p96
      %p98 = scmp.ne.s32.totalorder %s90, %s93
      %p99 = scmp.eq.s32.totalorder %s12, 0
      %p100 = por %p98, %p99
      %p101 = scmp.ne.s32.totalorder %s90, %s93
      %p102 = scmp.eq.s32.totalorder %s17, 1
      %p103 = por %p101, %p102
      %p104 = scmp.ne.s32.totalorder %s93, %s94
      %p105 = scmp.eq.s32.totalorder %s17, 0
      %p106 = por %p104, %p105
      %p107 = scmp.ne.s32.totalorder %s93, %s94
      %p108 = scmp.eq.s32.totalorder %s18, 1
      %p109 = por %p107, %p108
      %p111 = scmp.ne.s32.totalorder %s94, %s110
      %p112 = scmp.eq.s32.totalorder %s18, 0
      %p113 = por %p111, %p112
      %p114 = scmp.le.s32.totalorder 1, %s12
      %p115 = scmp.lt.s32.totalorder %s12, 3
      %p116 = pnand %p114, %p115
      %p117 = pneg %p116
      // Predicated region
      $region9: #{double_conv.5} parent=5 // pred_check
        _
      $region10: #{double_conv.5} parent=5 // pred_check_branch
        %119 = sbr.rel (%p116) target = $region12
      $region11: #{double_conv.5} parent=5 // pred_region
        %s120 = ssub.s32 %s12, 1
        // Predicated region
        $region13: #{double_conv.5} parent=11 // pred_check
          %p121 = pneg %p59
        $region14: #{double_conv.5} parent=11 // pred_check_branch
          %123 = sbr.rel (%p121) target = $region16
        $region15: #{double_conv.5} parent=11 // pred_region
          _
        $region16: #{double_conv.5} parent=11 // pred_fallthru
          _
        // Predicated region
        $region17: #{double_conv.5} parent=11 // pred_check
          %p124 = pneg %p80
        $region18: #{double_conv.5} parent=11 // pred_check_branch
          %126 = sbr.rel (%p124) target = $region20
        $region19: #{double_conv.5} parent=11 // pred_region
          _
        $region20: #{double_conv.5} parent=11 // pred_fallthru
          _
      $region12: #{double_conv.5} parent=5 // pred_fallthru
        _
      %p127 = scmp.lt.s32.totalorder %s12, 2
      // Predicated region
      $region21: #{double_conv.5} parent=5 // pred_check
        %p128 = pneg %p127
      $region22: #{double_conv.5} parent=5 // pred_check_branch
        %130 = sbr.rel (%p128) target = $region24
      $region23: #{double_conv.5} parent=5 // pred_region
        // Predicated region
        $region25: #{double_conv.5} parent=23 // pred_check
          %p131 = pneg %p32
        $region26: #{double_conv.5} parent=23 // pred_check_branch
          %133 = sbr.rel (%p131) target = $region28
        $region27: #{double_conv.5} parent=23 // pred_region
          %p134 = scmp.lt.s32.totalorder %s12, 1
          %s135 = scalar_select %p134, %s12, 1
          %s136 = smul.addr %s135, 32
          %s137 = smul.addr %s136, 4
          %s138 = scalar_lea.vmem %s0, %s137
        $region28: #{double_conv.5} parent=23 // pred_fallthru
          _
      $region24: #{double_conv.5} parent=5 // pred_fallthru
        _
      %p139 = scmp.le.s32.totalorder 1, %s12
      %p140 = scmp.lt.s32.totalorder %s12, 3
      %p141 = pnand %p139, %p140
      %p142 = pneg %p141
      // Predicated region
      $region29: #{double_conv.5} parent=5 // pred_check
        _
      $region30: #{double_conv.5} parent=5 // pred_check_branch
        %144 = sbr.rel (%p141) target = $region32
      $region31: #{double_conv.5} parent=5 // pred_region
        %s145 = ssub.s32 %s12, 1
        %p146 = scmp.lt.s32.totalorder %s17, 1
        %s147 = scalar_select %p146, %s17, 1
        %s148 = smul.addr %s147, 32
        %s149 = smul.addr %s148, 4
        %s150 = scalar_lea.vmem %s0, %s149
        %p151 = pneg %p38
        %p152 = pneg %p35
        %p153 = pneg %p59
        %p154 = pneg %p56
        %p155 = pneg %p80
        %p156 = pneg %p77
        %p157 = pneg %p106
        %p158 = pneg %p103
        %s159 = sand.u32 %s93, 1
        %s160 = scalar_lea.sflag [#allocation3], %s159
        %s161 = sand.u32 %s93, 1
        %s162 = smul.addr %s161, 256
        %s163 = scalar_lea.vmem [#allocation2], %s162
        %p164 = scmp.lt.s32.totalorder %s17, 1
        %s165 = scalar_select %p164, %s17, 1
        %s166 = smul.addr %s165, 32
        %s167 = smul.addr %s166, 4
        %s168 = scalar_lea.vmem %s0, %s167
        %v169 = vld [vmem:[%s168] sm:$0xf]
        %v170 = vld [vmem:[%s168 + $0x4] sm:$0xf]
        %v171 = vld [vmem:[%s168 + $0x8] sm:$0xf]
        %v172 = vld [vmem:[%s168 + $0xc] sm:$0xf]
        %v173 = vld [vmem:[%s168 + $0x10] sm:$0xf]
        %v174 = vld [vmem:[%s168 + $0x14] sm:$0xf]
        %v175 = vld [vmem:[%s168 + $0x18] sm:$0xf]
        %v176 = vld [vmem:[%s168 + $0x1c] sm:$0xf]
        %v177 = vld [vmem:[%s168 + $0x20] sm:$0xf]
        %v178 = vld [vmem:[%s168 + $0x24] sm:$0xf]
        %v179 = vld [vmem:[%s168 + $0x28] sm:$0xf]
        %v180 = vld [vmem:[%s168 + $0x2c] sm:$0xf]
        %v181 = vld [vmem:[%s168 + $0x30] sm:$0xf]
        %v182 = vld [vmem:[%s168 + $0x34] sm:$0xf]
        %v183 = vld [vmem:[%s168 + $0x38] sm:$0xf]
        %v184 = vld [vmem:[%s168 + $0x3c] sm:$0xf]
        %v185 = vld [vmem:[%s168 + $0x40] sm:$0xf]
        %v186 = vld [vmem:[%s168 + $0x44] sm:$0xf]
        %v187 = vld [vmem:[%s168 + $0x48] sm:$0xf]
        %v188 = vld [vmem:[%s168 + $0x4c] sm:$0xf]
        %v189 = vld [vmem:[%s168 + $0x50] sm:$0xf]
        %v190 = vld [vmem:[%s168 + $0x54] sm:$0xf]
        %v191 = vld [vmem:[%s168 + $0x58] sm:$0xf]
        %v192 = vld [vmem:[%s168 + $0x5c] sm:$0xf]
        %v193 = vld [vmem:[%s168 + $0x60] sm:$0xf]
        %v194 = vld [vmem:[%s168 + $0x64] sm:$0xf]
        %v195 = vld [vmem:[%s168 + $0x68] sm:$0xf]
        %v196 = vld [vmem:[%s168 + $0x6c] sm:$0xf]
        %v197 = vld [vmem:[%s168 + $0x70] sm:$0xf]
        %v198 = vld [vmem:[%s168 + $0x74] sm:$0xf]
        %v199 = vld [vmem:[%s168 + $0x78] sm:$0xf]
        %v200 = vld [vmem:[%s168 + $0x7c] sm:$0xf]
        %v201 = vunpack.c.l.bf16 %v169
        %v202 = vunpack.c.l.bf16 %v170
        %v203 = vunpack.c.l.bf16 %v171
        %v204 = vunpack.c.l.bf16 %v172
        %v205 = vunpack.c.l.bf16 %v173
        %v206 = vunpack.c.l.bf16 %v174
        %v207 = vunpack.c.l.bf16 %v175
        %v208 = vunpack.c.l.bf16 %v176
        %v209 = vunpack.c.l.bf16 %v177
        %v210 = vunpack.c.l.bf16 %v178
        %v211 = vunpack.c.l.bf16 %v179
        %v212 = vunpack.c.l.bf16 %v180
        %v213 = vunpack.c.l.bf16 %v181
        %v214 = vunpack.c.l.bf16 %v182
        %v215 = vunpack.c.l.bf16 %v183
        %v216 = vunpack.c.l.bf16 %v184
        %v217 = vunpack.c.l.bf16 %v185
        %v218 = vunpack.c.l.bf16 %v186
        %v219 = vunpack.c.l.bf16 %v187
        %v220 = vunpack.c.l.bf16 %v188
        %v221 = vunpack.c.l.bf16 %v189
        %v222 = vunpack.c.l.bf16 %v190
        %v223 = vunpack.c.l.bf16 %v191
        %v224 = vunpack.c.l.bf16 %v192
        %v225 = vunpack.c.l.bf16 %v193
        %v226 = vunpack.c.l.bf16 %v194
        %v227 = vunpack.c.l.bf16 %v195
        %v228 = vunpack.c.l.bf16 %v196
        %v229 = vunpack.c.l.bf16 %v197
        %v230 = vunpack.c.l.bf16 %v198
        %v231 = vunpack.c.l.bf16 %v199
        %v232 = vunpack.c.l.bf16 %v200
        %v233 = vld [vmem:[%s1] sm:$0x1]
        %v234 = vld [vmem:[%s1 + $0x1] sm:$0x1]
        %v235 = vld [vmem:[%s1 + $0x2] sm:$0x1]
        %v236 = vld [vmem:[%s1 + $0x3] sm:$0x1]
        %v237 = vld [vmem:[%s1 + $0x4] sm:$0x1]
        %v238 = vld [vmem:[%s1 + $0x5] sm:$0x1]
        %v239 = vld [vmem:[%s1 + $0x6] sm:$0x1]
        %v240 = vld [vmem:[%s1 + $0x7] sm:$0x1]
        %v241 = vld [vmem:[%s1 + $0x8] sm:$0x1]
        %v242 = vld [vmem:[%s1 + $0x9] sm:$0x1]
        %v243 = vld [vmem:[%s1 + $0xa] sm:$0x1]
        %v244 = vld [vmem:[%s1 + $0xb] sm:$0x1]
        %v245 = vld [vmem:[%s1 + $0xc] sm:$0x1]
        %v246 = vld [vmem:[%s1 + $0xd] sm:$0x1]
        %v247 = vld [vmem:[%s1 + $0xe] sm:$0x1]
        %v248 = vld [vmem:[%s1 + $0xf] sm:$0x1]
        %v265 = vlaneseq
        %v266 = vshrl.u32 %v265, 7
        %v267 = vsub.s32 0, %v266
        %v268 = vrot.slane %v233, %v267
        %v269 = vlaneseq
        %v270 = vshrl.u32 %v269, 7
        %v271 = vsub.s32 0, %v270
        %v272 = vrot.slane %v234, %v271
        %v273 = vlaneseq
        %v274 = vshrl.u32 %v273, 7
        %v275 = vsub.s32 0, %v274
        %v276 = vrot.slane %v235, %v275
        %v277 = vlaneseq
        %v278 = vshrl.u32 %v277, 7
        %v279 = vsub.s32 0, %v278
        %v280 = vrot.slane %v236, %v279
        %v281 = vlaneseq
        %v282 = vshrl.u32 %v281, 7
        %v283 = vsub.s32 0, %v282
        %v284 = vrot.slane %v237, %v283
        %v285 = vlaneseq
        %v286 = vshrl.u32 %v285, 7
        %v287 = vsub.s32 0, %v286
        %v288 = vrot.slane %v238, %v287
        %v289 = vlaneseq
        %v290 = vshrl.u32 %v289, 7
        %v291 = vsub.s32 0, %v290
        %v292 = vrot.slane %v239, %v291
        %v293 = vlaneseq
        %v294 = vshrl.u32 %v293, 7
        %v295 = vsub.s32 0, %v294
        %v296 = vrot.slane %v240, %v295
        %v297 = vlaneseq
        %v298 = vshrl.u32 %v297, 7
        %v299 = vsub.s32 0, %v298
        %v300 = vrot.slane %v241, %v299
        %v301 = vlaneseq
        %v302 = vshrl.u32 %v301, 7
        %v303 = vsub.s32 0, %v302
        %v304 = vrot.slane %v242, %v303
        %v305 = vlaneseq
        %v306 = vshrl.u32 %v305, 7
        %v307 = vsub.s32 0, %v306
        %v308 = vrot.slane %v243, %v307
        %v309 = vlaneseq
        %v310 = vshrl.u32 %v309, 7
        %v311 = vsub.s32 0, %v310
        %v312 = vrot.slane %v244, %v311
        %v313 = vlaneseq
        %v314 = vshrl.u32 %v313, 7
        %v315 = vsub.s32 0, %v314
        %v316 = vrot.slane %v245, %v315
        %v317 = vlaneseq
        %v318 = vshrl.u32 %v317, 7
        %v319 = vsub.s32 0, %v318
        %v320 = vrot.slane %v246, %v319
        %v321 = vlaneseq
        %v322 = vshrl.u32 %v321, 7
        %v323 = vsub.s32 0, %v322
        %v324 = vrot.slane %v247, %v323
        %v325 = vlaneseq
        %v326 = vshrl.u32 %v325, 7
        %v327 = vsub.s32 0, %v326
        %v328 = vrot.slane %v248, %v327
        %329 = vset.pattern.permute.xlu0 0
        %330 = vperm.xlu0 %329, %v268
        %v331 = vpop.permute.xlu0 %330
        %333 = vset.pattern.permute.xlu0 0
        %334 = vperm.xlu0 %333, %v272
        %v335 = vpop.permute.xlu0 %334
        %337 = vset.pattern.permute.xlu0 0
        %338 = vperm.xlu0 %337, %v276
        %v339 = vpop.permute.xlu0 %338
        %341 = vset.pattern.permute.xlu0 0
        %342 = vperm.xlu0 %341, %v280
        %v343 = vpop.permute.xlu0 %342
        %345 = vset.pattern.permute.xlu0 0
        %346 = vperm.xlu0 %345, %v284
        %v347 = vpop.permute.xlu0 %346
        %349 = vset.pattern.permute.xlu0 0
        %350 = vperm.xlu0 %349, %v288
        %v351 = vpop.permute.xlu0 %350
        %353 = vset.pattern.permute.xlu0 0
        %354 = vperm.xlu0 %353, %v292
        %v355 = vpop.permute.xlu0 %354
        %357 = vset.pattern.permute.xlu0 0
        %358 = vperm.xlu0 %357, %v296
        %v359 = vpop.permute.xlu0 %358
        %361 = vset.pattern.permute.xlu0 0
        %362 = vperm.xlu0 %361, %v300
        %v363 = vpop.permute.xlu0 %362
        %365 = vset.pattern.permute.xlu0 0
        %366 = vperm.xlu0 %365, %v304
        %v367 = vpop.permute.xlu0 %366
        %369 = vset.pattern.permute.xlu0 0
        %370 = vperm.xlu0 %369, %v308
        %v371 = vpop.permute.xlu0 %370
        %373 = vset.pattern.permute.xlu0 0
        %374 = vperm.xlu0 %373, %v312
        %v375 = vpop.permute.xlu0 %374
        %377 = vset.pattern.permute.xlu0 0
        %378 = vperm.xlu0 %377, %v316
        %v379 = vpop.permute.xlu0 %378
        %381 = vset.pattern.permute.xlu0 0
        %382 = vperm.xlu0 %381, %v320
        %v383 = vpop.permute.xlu0 %382
        %385 = vset.pattern.permute.xlu0 0
        %386 = vperm.xlu0 %385, %v324
        %v387 = vpop.permute.xlu0 %386
        %389 = vset.pattern.permute.xlu0 0
        %390 = vperm.xlu0 %389, %v328
        %v391 = vpop.permute.xlu0 %390
        %v393 = vmul.f32 %v201, %v331
        %v394 = vmul.f32 %v202, %v331
        %v395 = vmul.f32 %v203, %v335
        %v396 = vmul.f32 %v204, %v335
        %v397 = vmul.f32 %v205, %v339
        %v398 = vmul.f32 %v206, %v339
        %v399 = vmul.f32 %v207, %v343
        %v400 = vmul.f32 %v208, %v343
        %v401 = vmul.f32 %v209, %v347
        %v402 = vmul.f32 %v210, %v347
        %v403 = vmul.f32 %v211, %v351
        %v404 = vmul.f32 %v212, %v351
        %v405 = vmul.f32 %v213, %v355
        %v406 = vmul.f32 %v214, %v355
        %v407 = vmul.f32 %v215, %v359
        %v408 = vmul.f32 %v216, %v359
        %v409 = vmul.f32 %v217, %v363
        %v410 = vmul.f32 %v218, %v363
        %v411 = vmul.f32 %v219, %v367
        %v412 = vmul.f32 %v220, %v367
        %v413 = vmul.f32 %v221, %v371
        %v414 = vmul.f32 %v222, %v371
        %v415 = vmul.f32 %v223, %v375
        %v416 = vmul.f32 %v224, %v375
        %v417 = vmul.f32 %v225, %v379
        %v418 = vmul.f32 %v226, %v379
        %v419 = vmul.f32 %v227, %v383
        %v420 = vmul.f32 %v228, %v383
        %v421 = vmul.f32 %v229, %v387
        %v422 = vmul.f32 %v230, %v387
        %v423 = vmul.f32 %v231, %v391
        %v424 = vmul.f32 %v232, %v391
        %v425 = vld [vmem:[%s2] sm:$0x1]
        %v426 = vld [vmem:[%s2 + $0x1] sm:$0x1]
        %v427 = vld [vmem:[%s2 + $0x2] sm:$0x1]
        %v428 = vld [vmem:[%s2 + $0x3] sm:$0x1]
        %v429 = vld [vmem:[%s2 + $0x4] sm:$0x1]
        %v430 = vld [vmem:[%s2 + $0x5] sm:$0x1]
        %v431 = vld [vmem:[%s2 + $0x6] sm:$0x1]
        %v432 = vld [vmem:[%s2 + $0x7] sm:$0x1]
        %v433 = vld [vmem:[%s2 + $0x8] sm:$0x1]
        %v434 = vld [vmem:[%s2 + $0x9] sm:$0x1]
        %v435 = vld [vmem:[%s2 + $0xa] sm:$0x1]
        %v436 = vld [vmem:[%s2 + $0xb] sm:$0x1]
        %v437 = vld [vmem:[%s2 + $0xc] sm:$0x1]
        %v438 = vld [vmem:[%s2 + $0xd] sm:$0x1]
        %v439 = vld [vmem:[%s2 + $0xe] sm:$0x1]
        %v440 = vld [vmem:[%s2 + $0xf] sm:$0x1]
        %v457 = vlaneseq
        %v458 = vshrl.u32 %v457, 7
        %v459 = vsub.s32 0, %v458
        %v460 = vrot.slane %v425, %v459
        %v461 = vlaneseq
        %v462 = vshrl.u32 %v461, 7
        %v463 = vsub.s32 0, %v462
        %v464 = vrot.slane %v426, %v463
        %v465 = vlaneseq
        %v466 = vshrl.u32 %v465, 7
        %v467 = vsub.s32 0, %v466
        %v468 = vrot.slane %v427, %v467
        %v469 = vlaneseq
        %v470 = vshrl.u32 %v469, 7
        %v471 = vsub.s32 0, %v470
        %v472 = vrot.slane %v428, %v471
        %v473 = vlaneseq
        %v474 = vshrl.u32 %v473, 7
        %v475 = vsub.s32 0, %v474
        %v476 = vrot.slane %v429, %v475
        %v477 = vlaneseq
        %v478 = vshrl.u32 %v477, 7
        %v479 = vsub.s32 0, %v478
        %v480 = vrot.slane %v430, %v479
        %v481 = vlaneseq
        %v482 = vshrl.u32 %v481, 7
        %v483 = vsub.s32 0, %v482
        %v484 = vrot.slane %v431, %v483
        %v485 = vlaneseq
        %v486 = vshrl.u32 %v485, 7
        %v487 = vsub.s32 0, %v486
        %v488 = vrot.slane %v432, %v487
        %v489 = vlaneseq
        %v490 = vshrl.u32 %v489, 7
        %v491 = vsub.s32 0, %v490
        %v492 = vrot.slane %v433, %v491
        %v493 = vlaneseq
        %v494 = vshrl.u32 %v493, 7
        %v495 = vsub.s32 0, %v494
        %v496 = vrot.slane %v434, %v495
        %v497 = vlaneseq
        %v498 = vshrl.u32 %v497, 7
        %v499 = vsub.s32 0, %v498
        %v500 = vrot.slane %v435, %v499
        %v501 = vlaneseq
        %v502 = vshrl.u32 %v501, 7
        %v503 = vsub.s32 0, %v502
        %v504 = vrot.slane %v436, %v503
        %v505 = vlaneseq
        %v506 = vshrl.u32 %v505, 7
        %v507 = vsub.s32 0, %v506
        %v508 = vrot.slane %v437, %v507
        %v509 = vlaneseq
        %v510 = vshrl.u32 %v509, 7
        %v511 = vsub.s32 0, %v510
        %v512 = vrot.slane %v438, %v511
        %v513 = vlaneseq
        %v514 = vshrl.u32 %v513, 7
        %v515 = vsub.s32 0, %v514
        %v516 = vrot.slane %v439, %v515
        %v517 = vlaneseq
        %v518 = vshrl.u32 %v517, 7
        %v519 = vsub.s32 0, %v518
        %v520 = vrot.slane %v440, %v519
        %521 = vset.pattern.permute.xlu0 0
        %522 = vperm.xlu0 %521, %v460
        %v523 = vpop.permute.xlu0 %522
        %525 = vset.pattern.permute.xlu0 0
        %526 = vperm.xlu0 %525, %v464
        %v527 = vpop.permute.xlu0 %526
        %529 = vset.pattern.permute.xlu0 0
        %530 = vperm.xlu0 %529, %v468
        %v531 = vpop.permute.xlu0 %530
        %533 = vset.pattern.permute.xlu0 0
        %534 = vperm.xlu0 %533, %v472
        %v535 = vpop.permute.xlu0 %534
        %537 = vset.pattern.permute.xlu0 0
        %538 = vperm.xlu0 %537, %v476
        %v539 = vpop.permute.xlu0 %538
        %541 = vset.pattern.permute.xlu0 0
        %542 = vperm.xlu0 %541, %v480
        %v543 = vpop.permute.xlu0 %542
        %545 = vset.pattern.permute.xlu0 0
        %546 = vperm.xlu0 %545, %v484
        %v547 = vpop.permute.xlu0 %546
        %549 = vset.pattern.permute.xlu0 0
        %550 = vperm.xlu0 %549, %v488
        %v551 = vpop.permute.xlu0 %550
        %553 = vset.pattern.permute.xlu0 0
        %554 = vperm.xlu0 %553, %v492
        %v555 = vpop.permute.xlu0 %554
        %557 = vset.pattern.permute.xlu0 0
        %558 = vperm.xlu0 %557, %v496
        %v559 = vpop.permute.xlu0 %558
        %561 = vset.pattern.permute.xlu0 0
        %562 = vperm.xlu0 %561, %v500
        %v563 = vpop.permute.xlu0 %562
        %565 = vset.pattern.permute.xlu0 0
        %566 = vperm.xlu0 %565, %v504
        %v567 = vpop.permute.xlu0 %566
        %569 = vset.pattern.permute.xlu0 0
        %570 = vperm.xlu0 %569, %v508
        %v571 = vpop.permute.xlu0 %570
        %573 = vset.pattern.permute.xlu0 0
        %574 = vperm.xlu0 %573, %v512
        %v575 = vpop.permute.xlu0 %574
        %577 = vset.pattern.permute.xlu0 0
        %578 = vperm.xlu0 %577, %v516
        %v579 = vpop.permute.xlu0 %578
        %581 = vset.pattern.permute.xlu0 0
        %582 = vperm.xlu0 %581, %v520
        %v583 = vpop.permute.xlu0 %582
        %v585 = vadd.f32 %v393, %v523
        %v586 = vadd.f32 %v394, %v523
        %v587 = vadd.f32 %v395, %v527
        %v588 = vadd.f32 %v396, %v527
        %v589 = vadd.f32 %v397, %v531
        %v590 = vadd.f32 %v398, %v531
        %v591 = vadd.f32 %v399, %v535
        %v592 = vadd.f32 %v400, %v535
        %v593 = vadd.f32 %v401, %v539
        %v594 = vadd.f32 %v402, %v539
        %v595 = vadd.f32 %v403, %v543
        %v596 = vadd.f32 %v404, %v543
        %v597 = vadd.f32 %v405, %v547
        %v598 = vadd.f32 %v406, %v547
        %v599 = vadd.f32 %v407, %v551
        %v600 = vadd.f32 %v408, %v551
        %v601 = vadd.f32 %v409, %v555
        %v602 = vadd.f32 %v410, %v555
        %v603 = vadd.f32 %v411, %v559
        %v604 = vadd.f32 %v412, %v559
        %v605 = vadd.f32 %v413, %v563
        %v606 = vadd.f32 %v414, %v563
        %v607 = vadd.f32 %v415, %v567
        %v608 = vadd.f32 %v416, %v567
        %v609 = vadd.f32 %v417, %v571
        %v610 = vadd.f32 %v418, %v571
        %v611 = vadd.f32 %v419, %v575
        %v612 = vadd.f32 %v420, %v575
        %v613 = vadd.f32 %v421, %v579
        %v614 = vadd.f32 %v422, %v579
        %v615 = vadd.f32 %v423, %v583
        %v616 = vadd.f32 %v424, %v583
        %v617 = vmax.f32 %v585, 0.0
        %v618 = vmax.f32 %v586, 0.0
        %v619 = vmax.f32 %v587, 0.0
        %v620 = vmax.f32 %v588, 0.0
        %v621 = vmax.f32 %v589, 0.0
        %v622 = vmax.f32 %v590, 0.0
        %v623 = vmax.f32 %v591, 0.0
        %v624 = vmax.f32 %v592, 0.0
        %v625 = vmax.f32 %v593, 0.0
        %v626 = vmax.f32 %v594, 0.0
        %v627 = vmax.f32 %v595, 0.0
        %v628 = vmax.f32 %v596, 0.0
        %v629 = vmax.f32 %v597, 0.0
        %v630 = vmax.f32 %v598, 0.0
        %v631 = vmax.f32 %v599, 0.0
        %v632 = vmax.f32 %v600, 0.0
        %v633 = vmax.f32 %v601, 0.0
        %v634 = vmax.f32 %v602, 0.0
        %v635 = vmax.f32 %v603, 0.0
        %v636 = vmax.f32 %v604, 0.0
        %v637 = vmax.f32 %v605, 0.0
        %v638 = vmax.f32 %v606, 0.0
        %v639 = vmax.f32 %v607, 0.0
        %v640 = vmax.f32 %v608, 0.0
        %v641 = vmax.f32 %v609, 0.0
        %v642 = vmax.f32 %v610, 0.0
        %v643 = vmax.f32 %v611, 0.0
        %v644 = vmax.f32 %v612, 0.0
        %v645 = vmax.f32 %v613, 0.0
        %v646 = vmax.f32 %v614, 0.0
        %v647 = vmax.f32 %v615, 0.0
        %v648 = vmax.f32 %v616, 0.0
        %vm649 = vcmask 130048
        %650 = vst.msk [vmem:[%s163] sm:$0xff] %vm649, %v617
        %651 = vst.msk [vmem:[%s163 + $0x8] sm:$0xff] %vm649, %v618
        %652 = vst.msk [vmem:[%s163 + $0x10] sm:$0xff] %vm649, %v619
        %653 = vst.msk [vmem:[%s163 + $0x18] sm:$0xff] %vm649, %v620
        %654 = vst.msk [vmem:[%s163 + $0x20] sm:$0xff] %vm649, %v621
        %655 = vst.msk [vmem:[%s163 + $0x28] sm:$0xff] %vm649, %v622
        %656 = vst.msk [vmem:[%s163 + $0x30] sm:$0xff] %vm649, %v623
        %657 = vst.msk [vmem:[%s163 + $0x38] sm:$0xff] %vm649, %v624
        %658 = vst.msk [vmem:[%s163 + $0x40] sm:$0xff] %vm649, %v625
        %659 = vst.msk [vmem:[%s163 + $0x48] sm:$0xff] %vm649, %v626
        %660 = vst.msk [vmem:[%s163 + $0x50] sm:$0xff] %vm649, %v627
        %661 = vst.msk [vmem:[%s163 + $0x58] sm:$0xff] %vm649, %v628
        %662 = vst.msk [vmem:[%s163 + $0x60] sm:$0xff] %vm649, %v629
        %663 = vst.msk [vmem:[%s163 + $0x68] sm:$0xff] %vm649, %v630
        %664 = vst.msk [vmem:[%s163 + $0x70] sm:$0xff] %vm649, %v631
        %665 = vst.msk [vmem:[%s163 + $0x78] sm:$0xff] %vm649, %v632
        %666 = vst.msk [vmem:[%s163 + $0x80] sm:$0xff] %vm649, %v633
        %667 = vst.msk [vmem:[%s163 + $0x88] sm:$0xff] %vm649, %v634
        %668 = vst.msk [vmem:[%s163 + $0x90] sm:$0xff] %vm649, %v635
        %669 = vst.msk [vmem:[%s163 + $0x98] sm:$0xff] %vm649, %v636
        %670 = vst.msk [vmem:[%s163 + $0xa0] sm:$0xff] %vm649, %v637
        %671 = vst.msk [vmem:[%s163 + $0xa8] sm:$0xff] %vm649, %v638
        %672 = vst.msk [vmem:[%s163 + $0xb0] sm:$0xff] %vm649, %v639
        %673 = vst.msk [vmem:[%s163 + $0xb8] sm:$0xff] %vm649, %v640
        %674 = vst.msk [vmem:[%s163 + $0xc0] sm:$0xff] %vm649, %v641
        %675 = vst.msk [vmem:[%s163 + $0xc8] sm:$0xff] %vm649, %v642
        %676 = vst.msk [vmem:[%s163 + $0xd0] sm:$0xff] %vm649, %v643
        %677 = vst.msk [vmem:[%s163 + $0xd8] sm:$0xff] %vm649, %v644
        %678 = vst.msk [vmem:[%s163 + $0xe0] sm:$0xff] %vm649, %v645
        %679 = vst.msk [vmem:[%s163 + $0xe8] sm:$0xff] %vm649, %v646
        %680 = vst.msk [vmem:[%s163 + $0xf0] sm:$0xff] %vm649, %v647
        %681 = vst.msk [vmem:[%s163 + $0xf8] sm:$0xff] %vm649, %v648
        %s682 = sand.u32 %s93, 1
        %s683 = scalar_lea.sflag [#allocation3], %s682
        %s684 = sand.u32 %s93, 1
        %s685 = smul.addr %s684, 256
        %s686 = scalar_lea.vmem [#allocation2], %s685
        // Predicated region
        $region33: #{double_conv.5} parent=31 // pred_check
          %p687 = pneg %p103
        $region34: #{double_conv.5} parent=31 // pred_check_branch
          %689 = sbr.rel (%p687) target = $region36
        $region35: #{double_conv.5} parent=31 // pred_region
          %s691 = ssub.s32 4096, 4096
          %692 = vsyncadd %s683, %s691
          %s693 = smul.addr %s17, 32
          %s694 = smul.addr %s693, 128
          %s695 = scalar_lea.hbm %s3, %s694
          %s696 = sshll.u32 %s686, 4
          %s697 = int_to_ptr.vmem [resolvable:$true] %s696
          %702 = dma.vmem_to_hbm [thread:$0]  %s697, 4096, %s695, %s683, 128, 128, 8
        $region36: #{double_conv.5} parent=31 // pred_fallthru
          _
      $region32: #{double_conv.5} parent=5 // pred_fallthru
        _
      %p703 = scmp.le.s32.totalorder 2, %s12
      // Predicated region
      $region37: #{double_conv.5} parent=5 // pred_check
        %p704 = pneg %p703
      $region38: #{double_conv.5} parent=5 // pred_check_branch
        %706 = sbr.rel (%p704) target = $region40
      $region39: #{double_conv.5} parent=5 // pred_region
        %s707 = ssub.s32 %s12, 2
        // Predicated region
        $region41: #{double_conv.5} parent=39 // pred_check
          %p708 = pneg %p109
        $region42: #{double_conv.5} parent=39 // pred_check_branch
          %710 = sbr.rel (%p708) target = $region44
        $region43: #{double_conv.5} parent=39 // pred_region
          %s711 = sand.u32 %s94, 1
          %s712 = scalar_lea.sflag [#allocation3], %s711
          %s713 = sand.u32 %s94, 1
          %s714 = smul.addr %s713, 256
          %s715 = scalar_lea.vmem [#allocation2], %s714
          %716 = dma.done %s712, 4096
        $region44: #{double_conv.5} parent=39 // pred_fallthru
          _
      $region40: #{double_conv.5} parent=5 // pred_fallthru
        _
    $region6: #{double_conv.5} parent=1 // loop_footer
      %s16 = sadd.s32 1, %s12
    $region7: #{double_conv.5} parent=1 // loop_footer_branch
      %11 = sbr.rel target = $region3
    $region8: #{double_conv.5} parent=1 // loop_exit
      _
    %717 = vsyncpa [#allocation3], 1
    %s718 = scalar_lea.sflag [#allocation3], 1
    %719 = vsyncpa %s718, 1

</llo_original>
